<compile_context>
chip_gen: v6e
topology: v6e:2x2x1
jax: 0.10.0
libtpu: 0.0.40
codegen_flags: <defaults>
</compile_context>

<pallas_src>
import functools
import math

import jax
import jax.numpy as jnp
from jax.experimental import pallas as pl
from jax.experimental.pallas import tpu as pltpu


def _encoder_stack_kernel(x_ref, bias_ref,
                          wqkv_ref, wo_ref, w1_ref, w2_ref, vec_ref,
                          out_ref,
                          *, n_heads, d_k, d_v, d_ff, eps=1e-5):
    """One (batch-tile, layer) grid step of the full encoder stack.

    x_ref:    (Bt, S, D)              original inputs (read only at layer 0)
    bias_ref: (Bt, 1, S)              additive key-padding bias (precomputed)
    wqkv_ref: (1, D, 2*H*dk + H*dv)   bf16, 1/sqrt(dk) folded into the Q slice
    wo_ref:   (1, H*dv, D)            bf16
    w1_ref:   (1, D, d_ff)            bf16
    w2_ref:   (1, d_ff, D)            bf16
    vec_ref:  (1, 8, L)               f32 packed biases / LayerNorm params
    out_ref:  (Bt, S, D)              VMEM-resident activation carry AND output
    """
    layer = pl.program_id(1)

    @pl.when(layer == 0)
    def _():
        out_ref[...] = x_ref[...].astype(out_ref.dtype)

    Bt, S, D = out_ref.shape
    H, dk, dv = n_heads, d_k, d_v
    Lqk = H * dk
    Lv = H * dv

    # Packed per-layer vectors (row layout fixed in _prepare_stacked_params).
    vec = vec_ref[0]                                   # (8, L) f32
    bqkv = vec[0:1, :2 * Lqk + Lv]
    bo, g1, be1 = vec[1:2, :D], vec[2:3, :D], vec[3:4, :D]
    bf1 = vec[4:5, :d_ff]
    bf2, g2, be2 = vec[5:6, :D], vec[6:7, :D], vec[7:8, :D]

    # Previous layer's output (layer 0: the inputs), carried in out_ref.
    x = out_ref[...].astype(jnp.float32)               # (Bt, S, D)
    x2 = x.reshape(Bt * S, D)                          # M = Bt*S for matmuls
    x_bf = x2.astype(jnp.bfloat16)

    # ---- fused QKV projection, whole batch tile at once ---------------------
    qkv = jnp.dot(x_bf, wqkv_ref[0],
                  preferred_element_type=jnp.float32) + bqkv   # (Bt*S, 2Lqk+Lv)

    # ---- multi-head attention (heads batched); static loop over batch tile --
    ctx_rows = []
    for b in range(Bt):                                # static unroll, Bt small
        rows = slice(b * S, (b + 1) * S)
        q3 = qkv[rows, :Lqk].reshape(S, H, dk).transpose(1, 0, 2)        # (H,S,dk)
        k3 = qkv[rows, Lqk:2 * Lqk].reshape(S, H, dk).transpose(1, 0, 2)
        v3 = qkv[rows, 2 * Lqk:].reshape(S, H, dv).transpose(1, 0, 2)    # (H,S,dv)

        scores = jnp.einsum('hqd,hkd->hqk',
                            q3.astype(jnp.bfloat16), k3.astype(jnp.bfloat16),
                            preferred_element_type=jnp.float32)          # (H,S,S)
        scores = scores + bias_ref[b][None, :, :]      # masked_fill semantics
        scores = scores - jnp.max(scores, axis=-1, keepdims=True)
        e = jnp.exp(scores)
        attn = e * pl.reciprocal(jnp.sum(e, axis=-1, keepdims=True), approx=True)
        ctx = jnp.einsum('hqk,hkd->hqd',
                         attn.astype(jnp.bfloat16), v3.astype(jnp.bfloat16),
                         preferred_element_type=jnp.float32)             # (H,S,dv)
        ctx_rows.append(ctx.transpose(1, 0, 2).reshape(S, H * dv))
    ctx_all = jnp.concatenate(ctx_rows, axis=0) if Bt > 1 else ctx_rows[0]

    # ---- output projection: one matmul over the whole batch tile ------------
    mha = jnp.dot(ctx_all.astype(jnp.bfloat16), wo_ref[0],
                  preferred_element_type=jnp.float32) + bo               # (Bt*S, D)

    # ---- residual + LayerNorm 1 (f32 elementwise) ----------------------------
    h1 = x2 + mha
    mu1 = jnp.mean(h1, axis=-1, keepdims=True)
    var1 = jnp.mean((h1 - mu1) ** 2, axis=-1, keepdims=True)
    h1 = (h1 - mu1) * jax.lax.rsqrt(var1 + eps) * g1 + be1

    # ---- FeedForward: Linear -> ReLU -> Linear (bf16 matmuls, f32 acc) ------
    ff = jnp.dot(h1.astype(jnp.bfloat16), w1_ref[0],
                 preferred_element_type=jnp.float32) + bf1
    ff = jnp.maximum(ff, 0.0)
    ff = jnp.dot(ff.astype(jnp.bfloat16), w2_ref[0],
                 preferred_element_type=jnp.float32) + bf2

    # ---- residual + LayerNorm 2 ----------------------------------------------
    h2 = h1 + ff
    mu2 = jnp.mean(h2, axis=-1, keepdims=True)
    var2 = jnp.mean((h2 - mu2) ** 2, axis=-1, keepdims=True)
    out = (h2 - mu2) * jax.lax.rsqrt(var2 + eps) * g2 + be2

    out_ref[...] = out.reshape(Bt, S, D).astype(out_ref.dtype)   # carry / final


def _prepare_stacked_params(params, *, n_heads, d_k, d_v, d_model, d_ff,
                            matmul_dtype=jnp.bfloat16):
    """Fuse QKV, fold 1/sqrt(d_k), pack small vectors, stack along a layer axis."""
    scale = 1.0 / math.sqrt(d_k)
    Lqk, Lv = n_heads * d_k, n_heads * d_v
    vec_len = max(2 * Lqk + Lv, d_model, d_ff)
    vec_len = ((vec_len + 127) // 128) * 128           # lane-pad the packed vectors

    wqkv, wo, w1, w2, vecs = [], [], [], [], []
    for p in params:
        wqkv.append(jnp.concatenate([p["wq"] * scale, p["wk"], p["wv"]], axis=1))
        wo.append(p["wo"])
        w1.append(p["w1"])
        w2.append(p["w2"])
        bqkv = jnp.concatenate([p["bq"] * scale, p["bk"], p["bv"]], axis=1)[0]
        rows = [bqkv, p["bo"][0], p["g1"][0], p["be1"][0],
                p["bf1"][0], p["bf2"][0], p["g2"][0], p["be2"][0]]
        packed = jnp.zeros((8, vec_len), jnp.float32)
        for i, r in enumerate(rows):
            packed = packed.at[i, :r.shape[0]].set(r.astype(jnp.float32))
        vecs.append(packed)

    return dict(
        wqkv=jnp.stack(wqkv).astype(matmul_dtype),     # (n, D, 2Lqk+Lv)
        wo=jnp.stack(wo).astype(matmul_dtype),         # (n, H*dv, D)
        w1=jnp.stack(w1).astype(matmul_dtype),         # (n, D, d_ff)
        w2=jnp.stack(w2).astype(matmul_dtype),         # (n, d_ff, D)
        vec=jnp.stack(vecs),                           # (n, 8, L) f32
    )


def encoder_forward(inputs, encoder_mask, params, *, n_heads, d_k, d_v,
                    batch_tile=None):
    """Equivalent of Encoder.forward: n EncoderBlocks, fused into one kernel."""
    B, S, D = inputs.shape
    n_layers = len(params)
    d_ff = params[0]["w1"].shape[1]

    if encoder_mask is None:
        encoder_mask = jnp.ones((B, 1, S), jnp.float32)
    # Hoisted (layer-invariant): key-padding mask -> additive bias, once.
    bias = jnp.where(encoder_mask == 0.0,
                     jnp.float32(-1e30), jnp.float32(0.0)).reshape(B, 1, S)
    bias = bias.astype(jnp.float32)

    Bt = B if batch_tile is None else batch_tile
    assert B % Bt == 0, "batch_tile must divide the batch size"
    nb = B // Bt

    sp = _prepare_stacked_params(params, n_heads=n_heads, d_k=d_k, d_v=d_v,
                                 d_model=D, d_ff=d_ff)
    Lqkv = sp["wqkv"].shape[-1]
    vec_len = sp["vec"].shape[-1]

    def wspec(a):
        n_trailing = a.ndim - 1
        return pl.BlockSpec((1,) + a.shape[1:],
                            lambda b, l, nt=n_trailing: (l,) + (0,) * nt)

    in_specs = [
        pl.BlockSpec((Bt, S, D), lambda b, l: (b, 0, 0)),   # inputs (layer-const)
        pl.BlockSpec((Bt, 1, S), lambda b, l: (b, 0, 0)),   # additive mask bias
        wspec(sp["wqkv"]), wspec(sp["wo"]),
        wspec(sp["w1"]), wspec(sp["w2"]), wspec(sp["vec"]),
    ]

    kernel = functools.partial(_encoder_stack_kernel, n_heads=n_heads,
                               d_k=d_k, d_v=d_v, d_ff=d_ff)

    # Advisory cost estimate so XLA can schedule around the fused call.
    flops = 2 * B * n_layers * S * (
        D * Lqkv + n_heads * d_k * S + n_heads * S * d_v
        + n_heads * d_v * D + 2 * D * d_ff)
    transcendentals = B * n_layers * n_heads * S * S
    weight_bytes = sum(int(sp[k].size) * sp[k].dtype.itemsize
                       for k in ("wqkv", "wo", "w1", "w2", "vec"))
    bytes_accessed = nb * weight_bytes + 2 * B * S * D * 4 + B * S * 4

    # Explicit VMEM budget: 2x streamed layer weights + activation carry +
    # attention working set (+headroom), clamped to 64 MiB so the request is
    # valid on v7x as well as v5e/v6e.
    w_layer = (D * Lqkv + n_heads * d_v * D + 2 * D * d_ff) * 2 + 8 * vec_len * 4
    act = 3 * Bt * S * D * 4 + 2 * Bt * S * 4
    attn_ws = 3 * n_heads * S * S * 4 + 2 * Bt * S * (Lqkv + d_ff) * 4
    vmem_limit = int(max(32 << 20,
                         min(64 << 20, 2 * w_layer + act + attn_ws + (4 << 20))))

    return pl.pallas_call(
        kernel,
        grid=(nb, n_layers),
        in_specs=in_specs,
        out_specs=pl.BlockSpec((Bt, S, D), lambda b, l: (b, 0, 0)),
        out_shape=jax.ShapeDtypeStruct((B, S, D), inputs.dtype),
        compiler_params=pltpu.CompilerParams(
            dimension_semantics=("parallel", "arbitrary"),
            vmem_limit_bytes=vmem_limit),
        cost_estimate=pl.CostEstimate(flops=int(flops),
                                      transcendentals=int(transcendentals),
                                      bytes_accessed=int(bytes_accessed)),
    )(inputs, bias, sp["wqkv"], sp["wo"], sp["w1"], sp["w2"], sp["vec"])


def init_encoder_params(key, *, d_model, d_k, d_v, n_heads, d_ff, n):
    """Deterministic synthetic parameters (same shapes as the nn.Module)."""
    params = []
    for i in range(n):
        ks = jax.random.split(jax.random.fold_in(key, i), 6)
        s = 0.05
        params.append({
            "wq": s * jax.random.normal(ks[0], (d_model, n_heads * d_k), jnp.float32),
            "bq": jnp.zeros((1, n_heads * d_k), jnp.float32),
            "wk": s * jax.random.normal(ks[1], (d_model, n_heads * d_k), jnp.float32),
            "bk": jnp.zeros((1, n_heads * d_k), jnp.float32),
            "wv": s * jax.random.normal(ks[2], (d_model, n_heads * d_v), jnp.float32),
            "bv": jnp.zeros((1, n_heads * d_v), jnp.float32),
            "wo": s * jax.random.normal(ks[3], (n_heads * d_v, d_model), jnp.float32),
            "bo": jnp.zeros((1, d_model), jnp.float32),
            "g1": jnp.ones((1, d_model), jnp.float32),
            "be1": jnp.zeros((1, d_model), jnp.float32),
            "w1": s * jax.random.normal(ks[4], (d_model, d_ff), jnp.float32),
            "bf1": jnp.zeros((1, d_ff), jnp.float32),
            "w2": s * jax.random.normal(ks[5], (d_ff, d_model), jnp.float32),
            "bf2": jnp.zeros((1, d_model), jnp.float32),
            "g2": jnp.ones((1, d_model), jnp.float32),
            "be2": jnp.zeros((1, d_model), jnp.float32),
        })
    return params


def _encoder_reference(x, mask, params, *, n_heads, d_k, d_v, eps=1e-5):
    """Pure-JAX f32 reference of the PyTorch Encoder forward pass."""
    def ln(h, g, b):
        mu = jnp.mean(h, -1, keepdims=True)
        var = jnp.mean((h - mu) ** 2, -1, keepdims=True)
        return (h - mu) * jax.lax.rsqrt(var + eps) * g + b

    out = x
    B, S, _ = x.shape
    for p in params:
        q = (out @ p["wq"] + p["bq"]).reshape(B, S, n_heads, d_k).transpose(0, 2, 1, 3)
        k = (out @ p["wk"] + p["bk"]).reshape(B, S, n_heads, d_k).transpose(0, 2, 1, 3)
        v = (out @ p["wv"] + p["bv"]).reshape(B, S, n_heads, d_v).transpose(0, 2, 1, 3)
        s = jnp.einsum('bhqd,bhkd->bhqk', q, k) / jnp.sqrt(jnp.float32(d_k))
        s = jnp.where(mask[:, None, :, :] == 0.0, -1e30, s)
        a = jax.nn.softmax(s, axis=-1)
        ctx = jnp.einsum('bhqk,bhkd->bhqd', a, v).transpose(0, 2, 1, 3)
        mha = ctx.reshape(B, S, n_heads * d_v) @ p["wo"] + p["bo"]
        h1 = ln(out + mha, p["g1"], p["be1"])
        ff = jnp.maximum(h1 @ p["w1"] + p["bf1"], 0.0) @ p["w2"] + p["bf2"]
        out = ln(h1 + ff, p["g2"], p["be2"])
    return out


if __name__ == "__main__":
    # Small, forward-consistent shapes.
    B, S = 2, 8
    d_model, d_k, d_v, n_heads, d_ff, n = 32, 16, 16, 4, 64, 2

    key = jax.random.PRNGKey(0)
    k_x, k_p = jax.random.split(key)

    x = jax.random.normal(k_x, (B, S, d_model), jnp.float32)
    # Padding mask: second sequence has its last 2 positions padded out.
    mask = jnp.ones((B, 1, S), jnp.float32).at[1, 0, -2:].set(0.0)

    params = init_encoder_params(k_p, d_model=d_model, d_k=d_k, d_v=d_v,
                                 n_heads=n_heads, d_ff=d_ff, n=n)

    out = encoder_forward(x, mask, params, n_heads=n_heads, d_k=d_k, d_v=d_v)
    out = jax.block_until_ready(out)

    ref = _encoder_reference(x, mask, params, n_heads=n_heads, d_k=d_k, d_v=d_v)

    assert out.shape == (B, S, d_model) and out.dtype == jnp.float32
    assert bool(jnp.all(jnp.isfinite(out)))
    # bf16 matmul boundary -> loose tolerance vs the f32 reference.
    assert bool(jnp.max(jnp.abs(out - ref)) < 0.25)
    print("KERNEL_OK")
</pallas_src>

<mosaic_0001>
module attributes {stable_mosaic.version = 11 : i64} {
  func.func @_encoder_stack_kernel(%arg0: i32, %arg1: i32, %arg2: memref<2x8x32xf32, #tpu.memory_space<vmem>>, %arg3: memref<2x1x8xf32, #tpu.memory_space<vmem>>, %arg4: memref<1x32x192xbf16, #tpu.memory_space<vmem>>, %arg5: memref<1x64x32xbf16, #tpu.memory_space<vmem>>, %arg6: memref<1x32x64xbf16, #tpu.memory_space<vmem>>, %arg7: memref<1x64x32xbf16, #tpu.memory_space<vmem>>, %arg8: memref<1x8x256xf32, #tpu.memory_space<vmem>>, %arg9: memref<2x8x32xf32, #tpu.memory_space<vmem>>) attributes {dimension_semantics = [#tpu.dimension_semantics<parallel>, #tpu.dimension_semantics<arbitrary>], iteration_bounds = array<i64: 1, 2>, scalar_prefetch = 0 : i64, scratch_operands = 0 : i64, tpu.core_type = #tpu.core_type<tc>, window_params = [{transform_indices = @transform_0, window_bounds = array<i64: 2, 8, 32>}, {transform_indices = @transform_1, window_bounds = array<i64: 2, 1, 8>}, {transform_indices = @transform_2, window_bounds = array<i64: 1, 32, 192>}, {transform_indices = @transform_3, window_bounds = array<i64: 1, 64, 32>}, {transform_indices = @transform_4, window_bounds = array<i64: 1, 32, 64>}, {transform_indices = @transform_5, window_bounds = array<i64: 1, 64, 32>}, {transform_indices = @transform_6, window_bounds = array<i64: 1, 8, 256>}, {transform_indices = @transform_7, window_bounds = array<i64: 2, 8, 32>}]} {
    %c0_i32 = arith.constant 0 : i32
    %0 = arith.cmpi eq, %arg1, %c0_i32 : i32
    %1 = arith.extui %0 : i1 to i32
    %c0_i32_0 = arith.constant 0 : i32
    %2 = arith.cmpi ne, %1, %c0_i32_0 : i32
    scf.if %2 {
      %c0_48 = arith.constant 0 : index
      %c0_49 = arith.constant 0 : index
      %c0_50 = arith.constant 0 : index
      %154 = vector.load %arg2[%c0_48, %c0_49, %c0_50] : memref<2x8x32xf32, #tpu.memory_space<vmem>>, vector<2x8x32xf32>
      %c0_51 = arith.constant 0 : index
      %c0_52 = arith.constant 0 : index
      %c0_53 = arith.constant 0 : index
      %155 = vector.load %arg9[%c0_51, %c0_52, %c0_53] : memref<2x8x32xf32, #tpu.memory_space<vmem>>, vector<2x8x32xf32>
      tpu.vector_store %arg9[%c0_51, %c0_52, %c0_53], %154 {strides = array<i32>} : memref<2x8x32xf32, #tpu.memory_space<vmem>>, vector<2x8x32xf32>,
    } else {
    }
    %c0 = arith.constant 0 : index
    %c0_1 = arith.constant 0 : index
    %c0_2 = arith.constant 0 : index
    %3 = vector.load %arg8[%c0, %c0_1, %c0_2] : memref<1x8x256xf32, #tpu.memory_space<vmem>>, vector<1x8x256xf32>
    %4 = vector.shape_cast %3 : vector<1x8x256xf32> to vector<8x256xf32>
    %5 = vector.extract_strided_slice %4 {offsets = [0, 0], sizes = [1, 192], strides = [1, 1]} : vector<8x256xf32> to vector<1x192xf32>
    %6 = vector.extract_strided_slice %4 {offsets = [1, 0], sizes = [1, 32], strides = [1, 1]} : vector<8x256xf32> to vector<1x32xf32>
    %7 = vector.extract_strided_slice %4 {offsets = [2, 0], sizes = [1, 32], strides = [1, 1]} : vector<8x256xf32> to vector<1x32xf32>
    %8 = vector.extract_strided_slice %4 {offsets = [3, 0], sizes = [1, 32], strides = [1, 1]} : vector<8x256xf32> to vector<1x32xf32>
    %9 = vector.extract_strided_slice %4 {offsets = [4, 0], sizes = [1, 64], strides = [1, 1]} : vector<8x256xf32> to vector<1x64xf32>
    %10 = vector.extract_strided_slice %4 {offsets = [5, 0], sizes = [1, 32], strides = [1, 1]} : vector<8x256xf32> to vector<1x32xf32>
    %11 = vector.extract_strided_slice %4 {offsets = [6, 0], sizes = [1, 32], strides = [1, 1]} : vector<8x256xf32> to vector<1x32xf32>
    %12 = vector.extract_strided_slice %4 {offsets = [7, 0], sizes = [1, 32], strides = [1, 1]} : vector<8x256xf32> to vector<1x32xf32>
    %c0_3 = arith.constant 0 : index
    %c0_4 = arith.constant 0 : index
    %c0_5 = arith.constant 0 : index
    %13 = vector.load %arg9[%c0_3, %c0_4, %c0_5] : memref<2x8x32xf32, #tpu.memory_space<vmem>>, vector<2x8x32xf32>
    %14 = vector.shape_cast %13 : vector<2x8x32xf32> to vector<16x32xf32>
    %15 = arith.truncf %14 : vector<16x32xf32> to vector<16x32xbf16>
    %c0_6 = arith.constant 0 : index
    %c0_7 = arith.constant 0 : index
    %c0_8 = arith.constant 0 : index
    %16 = vector.load %arg4[%c0_6, %c0_7, %c0_8] : memref<1x32x192xbf16, #tpu.memory_space<vmem>>, vector<1x32x192xbf16>
    %17 = vector.shape_cast %16 : vector<1x32x192xbf16> to vector<32x192xbf16>
    %cst = arith.constant dense<0.000000e+00> : vector<16x192xf32>
    %18 = tpu.matmul %15, %17, %cst {dimension_numbers = #tpu.dot_dimension_numbers<[1], [0], [0], [1], [0, 0, 1, 1], [], []>} : vector<16x32xbf16>, vector<32x192xbf16>, vector<16x192xf32> -> vector<16x192xf32>
    %19 = vector.broadcast %5 : vector<1x192xf32> to vector<16x192xf32>
    %20 = arith.addf %18, %19 : vector<16x192xf32>
    %21 = vector.extract_strided_slice %20 {offsets = [0, 0], sizes = [8, 64], strides = [1, 1]} : vector<16x192xf32> to vector<8x64xf32>
    %22 = vector.shape_cast %21 : vector<8x64xf32> to vector<8x4x16xf32>
    %23 = tpu.transpose %22, [1, 0, 2] : vector<8x4x16xf32> -> vector<4x8x16xf32>
    %24 = vector.extract_strided_slice %20 {offsets = [0, 64], sizes = [8, 64], strides = [1, 1]} : vector<16x192xf32> to vector<8x64xf32>
    %25 = vector.shape_cast %24 : vector<8x64xf32> to vector<8x4x16xf32>
    %26 = tpu.transpose %25, [1, 0, 2] : vector<8x4x16xf32> -> vector<4x8x16xf32>
    %27 = vector.extract_strided_slice %20 {offsets = [0, 128], sizes = [8, 64], strides = [1, 1]} : vector<16x192xf32> to vector<8x64xf32>
    %28 = vector.shape_cast %27 : vector<8x64xf32> to vector<8x4x16xf32>
    %29 = tpu.transpose %28, [1, 0, 2] : vector<8x4x16xf32> -> vector<4x8x16xf32>
    %30 = arith.truncf %23 : vector<4x8x16xf32> to vector<4x8x16xbf16>
    %31 = arith.truncf %26 : vector<4x8x16xf32> to vector<4x8x16xbf16>
    "tpu.trace_start"() <{level = 10 : i32, message = "hqd,hkd->hqk"}> : () -> ()
    %cst_9 = arith.constant dense<0.000000e+00> : vector<4x8x8xf32>
    %32 = tpu.matmul %30, %31, %cst_9 {dimension_numbers = #tpu.dot_dimension_numbers<[2], [2], [1], [1], [0, 0, 0, 1, 1, 1], [0], [0]>} : vector<4x8x16xbf16>, vector<4x8x16xbf16>, vector<4x8x8xf32> -> vector<4x8x8xf32>
    "tpu.trace_stop"() : () -> ()
    %c0_10 = arith.constant 0 : index
    %c0_11 = arith.constant 0 : index
    %c0_12 = arith.constant 0 : index
    %33 = vector.load %arg3[%c0_10, %c0_11, %c0_12] : memref<2x1x8xf32, #tpu.memory_space<vmem>>, vector<1x1x8xf32>
    %34 = vector.shape_cast %33 : vector<1x1x8xf32> to vector<1x8xf32>
    %35 = vector.shape_cast %34 : vector<1x8xf32> to vector<1x1x8xf32>
    %36 = vector.broadcast %35 : vector<1x1x8xf32> to vector<4x8x8xf32>
    %37 = arith.addf %32, %36 : vector<4x8x8xf32>
    %cst_13 = arith.constant dense<0xFF800000> : vector<4x8xf32>
    %38 = vector.multi_reduction <maximumf>, %37, %cst_13 [2] : vector<4x8x8xf32> to vector<4x8xf32>
    %39 = vector.shape_cast %38 : vector<4x8xf32> to vector<4x8x1xf32>
    %40 = vector.broadcast %39 : vector<4x8x1xf32> to vector<4x8x8xf32>
    %41 = arith.subf %37, %40 : vector<4x8x8xf32>
    %42 = math.exp %41 : vector<4x8x8xf32>
    %cst_14 = arith.constant dense<0.000000e+00> : vector<4x8xf32>
    %43 = vector.multi_reduction <add>, %42, %cst_14 [2] : vector<4x8x8xf32> to vector<4x8xf32>
    %44 = vector.shape_cast %43 : vector<4x8xf32> to vector<4x8x1xf32>
    %45 = tpu.reciprocal %44 {approx = true} : vector<4x8x1xf32> -> vector<4x8x1xf32>
    %46 = vector.broadcast %45 : vector<4x8x1xf32> to vector<4x8x8xf32>
    %47 = arith.mulf %42, %46 : vector<4x8x8xf32>
    %48 = arith.truncf %47 : vector<4x8x8xf32> to vector<4x8x8xbf16>
    %49 = arith.truncf %29 : vector<4x8x16xf32> to vector<4x8x16xbf16>
    "tpu.trace_start"() <{level = 10 : i32, message = "hqk,hkd->hqd"}> : () -> ()
    %cst_15 = arith.constant dense<0.000000e+00> : vector<4x8x16xf32>
    %50 = tpu.matmul %48, %49, %cst_15 {dimension_numbers = #tpu.dot_dimension_numbers<[2], [1], [1], [2], [0, 0, 0, 1, 1, 2], [0], [0]>} : vector<4x8x8xbf16>, vector<4x8x16xbf16>, vector<4x8x16xf32> -> vector<4x8x16xf32>
    "tpu.trace_stop"() : () -> ()
    %51 = tpu.transpose %50, [1, 0, 2] : vector<4x8x16xf32> -> vector<8x4x16xf32>
    %52 = vector.shape_cast %51 : vector<8x4x16xf32> to vector<8x64xf32>
    %53 = vector.extract_strided_slice %20 {offsets = [8, 0], sizes = [8, 64], strides = [1, 1]} : vector<16x192xf32> to vector<8x64xf32>
    %54 = vector.shape_cast %53 : vector<8x64xf32> to vector<8x4x16xf32>
    %55 = tpu.transpose %54, [1, 0, 2] : vector<8x4x16xf32> -> vector<4x8x16xf32>
    %56 = vector.extract_strided_slice %20 {offsets = [8, 64], sizes = [8, 64], strides = [1, 1]} : vector<16x192xf32> to vector<8x64xf32>
    %57 = vector.shape_cast %56 : vector<8x64xf32> to vector<8x4x16xf32>
    %58 = tpu.transpose %57, [1, 0, 2] : vector<8x4x16xf32> -> vector<4x8x16xf32>
    %59 = vector.extract_strided_slice %20 {offsets = [8, 128], sizes = [8, 64], strides = [1, 1]} : vector<16x192xf32> to vector<8x64xf32>
    %60 = vector.shape_cast %59 : vector<8x64xf32> to vector<8x4x16xf32>
    %61 = tpu.transpose %60, [1, 0, 2] : vector<8x4x16xf32> -> vector<4x8x16xf32>
    %62 = arith.truncf %55 : vector<4x8x16xf32> to vector<4x8x16xbf16>
    %63 = arith.truncf %58 : vector<4x8x16xf32> to vector<4x8x16xbf16>
    "tpu.trace_start"() <{level = 10 : i32, message = "hqd,hkd->hqk"}> : () -> ()
    %cst_16 = arith.constant dense<0.000000e+00> : vector<4x8x8xf32>
    %64 = tpu.matmul %62, %63, %cst_16 {dimension_numbers = #tpu.dot_dimension_numbers<[2], [2], [1], [1], [0, 0, 0, 1, 1, 1], [0], [0]>} : vector<4x8x16xbf16>, vector<4x8x16xbf16>, vector<4x8x8xf32> -> vector<4x8x8xf32>
    "tpu.trace_stop"() : () -> ()
    %c1 = arith.constant 1 : index
    %c0_17 = arith.constant 0 : index
    %c0_18 = arith.constant 0 : index
    %65 = vector.load %arg3[%c1, %c0_17, %c0_18] : memref<2x1x8xf32, #tpu.memory_space<vmem>>, vector<1x1x8xf32>
    %66 = vector.shape_cast %65 : vector<1x1x8xf32> to vector<1x8xf32>
    %67 = vector.shape_cast %66 : vector<1x8xf32> to vector<1x1x8xf32>
    %68 = vector.broadcast %67 : vector<1x1x8xf32> to vector<4x8x8xf32>
    %69 = arith.addf %64, %68 : vector<4x8x8xf32>
    %cst_19 = arith.constant dense<0xFF800000> : vector<4x8xf32>
    %70 = vector.multi_reduction <maximumf>, %69, %cst_19 [2] : vector<4x8x8xf32> to vector<4x8xf32>
    %71 = vector.shape_cast %70 : vector<4x8xf32> to vector<4x8x1xf32>
    %72 = vector.broadcast %71 : vector<4x8x1xf32> to vector<4x8x8xf32>
    %73 = arith.subf %69, %72 : vector<4x8x8xf32>
    %74 = math.exp %73 : vector<4x8x8xf32>
    %cst_20 = arith.constant dense<0.000000e+00> : vector<4x8xf32>
    %75 = vector.multi_reduction <add>, %74, %cst_20 [2] : vector<4x8x8xf32> to vector<4x8xf32>
    %76 = vector.shape_cast %75 : vector<4x8xf32> to vector<4x8x1xf32>
    %77 = tpu.reciprocal %76 {approx = true} : vector<4x8x1xf32> -> vector<4x8x1xf32>
    %78 = vector.broadcast %77 : vector<4x8x1xf32> to vector<4x8x8xf32>
    %79 = arith.mulf %74, %78 : vector<4x8x8xf32>
    %80 = arith.truncf %79 : vector<4x8x8xf32> to vector<4x8x8xbf16>
    %81 = arith.truncf %61 : vector<4x8x16xf32> to vector<4x8x16xbf16>
    "tpu.trace_start"() <{level = 10 : i32, message = "hqk,hkd->hqd"}> : () -> ()
    %cst_21 = arith.constant dense<0.000000e+00> : vector<4x8x16xf32>
    %82 = tpu.matmul %80, %81, %cst_21 {dimension_numbers = #tpu.dot_dimension_numbers<[2], [1], [1], [2], [0, 0, 0, 1, 1, 2], [0], [0]>} : vector<4x8x8xbf16>, vector<4x8x16xbf16>, vector<4x8x16xf32> -> vector<4x8x16xf32>
    "tpu.trace_stop"() : () -> ()
    %83 = tpu.transpose %82, [1, 0, 2] : vector<4x8x16xf32> -> vector<8x4x16xf32>
    %84 = vector.shape_cast %83 : vector<8x4x16xf32> to vector<8x64xf32>
    %85 = tpu.concatenate %52, %84 in 0 : vector<8x64xf32>, vector<8x64xf32> -> vector<16x64xf32>
    %86 = arith.truncf %85 : vector<16x64xf32> to vector<16x64xbf16>
    %c0_22 = arith.constant 0 : index
    %c0_23 = arith.constant 0 : index
    %c0_24 = arith.constant 0 : index
    %87 = vector.load %arg5[%c0_22, %c0_23, %c0_24] : memref<1x64x32xbf16, #tpu.memory_space<vmem>>, vector<1x64x32xbf16>
    %88 = vector.shape_cast %87 : vector<1x64x32xbf16> to vector<64x32xbf16>
    %cst_25 = arith.constant dense<0.000000e+00> : vector<16x32xf32>
    %89 = tpu.matmul %86, %88, %cst_25 {dimension_numbers = #tpu.dot_dimension_numbers<[1], [0], [0], [1], [0, 0, 1, 1], [], []>} : vector<16x64xbf16>, vector<64x32xbf16>, vector<16x32xf32> -> vector<16x32xf32>
    %90 = vector.broadcast %6 : vector<1x32xf32> to vector<16x32xf32>
    %91 = arith.addf %89, %90 : vector<16x32xf32>
    %92 = arith.addf %14, %91 : vector<16x32xf32>
    %cst_26 = arith.constant dense<0.000000e+00> : vector<16xf32>
    %93 = vector.multi_reduction <add>, %92, %cst_26 [1] : vector<16x32xf32> to vector<16xf32>
    %94 = vector.shape_cast %93 : vector<16xf32> to vector<16x1xf32>
    %cst_27 = arith.constant 3.200000e+01 : f32
    %95 = vector.broadcast %cst_27 : f32 to vector<16x1xf32>
    %96 = arith.divf %94, %95 : vector<16x1xf32>
    %97 = vector.broadcast %96 : vector<16x1xf32> to vector<16x32xf32>
    %98 = arith.subf %92, %97 : vector<16x32xf32>
    %99 = arith.mulf %98, %98 : vector<16x32xf32>
    %cst_28 = arith.constant dense<0.000000e+00> : vector<16xf32>
    %100 = vector.multi_reduction <add>, %99, %cst_28 [1] : vector<16x32xf32> to vector<16xf32>
    %101 = vector.shape_cast %100 : vector<16xf32> to vector<16x1xf32>
    %cst_29 = arith.constant 3.200000e+01 : f32
    %102 = vector.broadcast %cst_29 : f32 to vector<16x1xf32>
    %103 = arith.divf %101, %102 : vector<16x1xf32>
    %104 = vector.broadcast %96 : vector<16x1xf32> to vector<16x32xf32>
    %105 = arith.subf %92, %104 : vector<16x32xf32>
    %cst_30 = arith.constant 9.99999974E-6 : f32
    %106 = vector.broadcast %cst_30 : f32 to vector<16x1xf32>
    %107 = arith.addf %103, %106 : vector<16x1xf32>
    %108 = math.rsqrt %107 : vector<16x1xf32>
    %109 = vector.broadcast %108 : vector<16x1xf32> to vector<16x32xf32>
    %110 = arith.mulf %105, %109 : vector<16x32xf32>
    %111 = vector.broadcast %7 : vector<1x32xf32> to vector<16x32xf32>
    %112 = arith.mulf %110, %111 : vector<16x32xf32>
    %113 = vector.broadcast %8 : vector<1x32xf32> to vector<16x32xf32>
    %114 = arith.addf %112, %113 : vector<16x32xf32>
    %115 = arith.truncf %114 : vector<16x32xf32> to vector<16x32xbf16>
    %c0_31 = arith.constant 0 : index
    %c0_32 = arith.constant 0 : index
    %c0_33 = arith.constant 0 : index
    %116 = vector.load %arg6[%c0_31, %c0_32, %c0_33] : memref<1x32x64xbf16, #tpu.memory_space<vmem>>, vector<1x32x64xbf16>
    %117 = vector.shape_cast %116 : vector<1x32x64xbf16> to vector<32x64xbf16>
    %cst_34 = arith.constant dense<0.000000e+00> : vector<16x64xf32>
    %118 = tpu.matmul %115, %117, %cst_34 {dimension_numbers = #tpu.dot_dimension_numbers<[1], [0], [0], [1], [0, 0, 1, 1], [], []>} : vector<16x32xbf16>, vector<32x64xbf16>, vector<16x64xf32> -> vector<16x64xf32>
    %119 = vector.broadcast %9 : vector<1x64xf32> to vector<16x64xf32>
    %120 = arith.addf %118, %119 : vector<16x64xf32>
    %cst_35 = arith.constant 0.000000e+00 : f32
    %121 = vector.broadcast %cst_35 : f32 to vector<16x64xf32>
    %122 = arith.maximumf %120, %121 : vector<16x64xf32>
    %123 = arith.truncf %122 : vector<16x64xf32> to vector<16x64xbf16>
    %c0_36 = arith.constant 0 : index
    %c0_37 = arith.constant 0 : index
    %c0_38 = arith.constant 0 : index
    %124 = vector.load %arg7[%c0_36, %c0_37, %c0_38] : memref<1x64x32xbf16, #tpu.memory_space<vmem>>, vector<1x64x32xbf16>
    %125 = vector.shape_cast %124 : vector<1x64x32xbf16> to vector<64x32xbf16>
    %cst_39 = arith.constant dense<0.000000e+00> : vector<16x32xf32>
    %126 = tpu.matmul %123, %125, %cst_39 {dimension_numbers = #tpu.dot_dimension_numbers<[1], [0], [0], [1], [0, 0, 1, 1], [], []>} : vector<16x64xbf16>, vector<64x32xbf16>, vector<16x32xf32> -> vector<16x32xf32>
    %127 = vector.broadcast %10 : vector<1x32xf32> to vector<16x32xf32>
    %128 = arith.addf %126, %127 : vector<16x32xf32>
    %129 = arith.addf %114, %128 : vector<16x32xf32>
    %cst_40 = arith.constant dense<0.000000e+00> : vector<16xf32>
    %130 = vector.multi_reduction <add>, %129, %cst_40 [1] : vector<16x32xf32> to vector<16xf32>
    %131 = vector.shape_cast %130 : vector<16xf32> to vector<16x1xf32>
    %cst_41 = arith.constant 3.200000e+01 : f32
    %132 = vector.broadcast %cst_41 : f32 to vector<16x1xf32>
    %133 = arith.divf %131, %132 : vector<16x1xf32>
    %134 = vector.broadcast %133 : vector<16x1xf32> to vector<16x32xf32>
    %135 = arith.subf %129, %134 : vector<16x32xf32>
    %136 = arith.mulf %135, %135 : vector<16x32xf32>
    %cst_42 = arith.constant dense<0.000000e+00> : vector<16xf32>
    %137 = vector.multi_reduction <add>, %136, %cst_42 [1] : vector<16x32xf32> to vector<16xf32>
    %138 = vector.shape_cast %137 : vector<16xf32> to vector<16x1xf32>
    %cst_43 = arith.constant 3.200000e+01 : f32
    %139 = vector.broadcast %cst_43 : f32 to vector<16x1xf32>
    %140 = arith.divf %138, %139 : vector<16x1xf32>
    %141 = vector.broadcast %133 : vector<16x1xf32> to vector<16x32xf32>
    %142 = arith.subf %129, %141 : vector<16x32xf32>
    %cst_44 = arith.constant 9.99999974E-6 : f32
    %143 = vector.broadcast %cst_44 : f32 to vector<16x1xf32>
    %144 = arith.addf %140, %143 : vector<16x1xf32>
    %145 = math.rsqrt %144 : vector<16x1xf32>
    %146 = vector.broadcast %145 : vector<16x1xf32> to vector<16x32xf32>
    %147 = arith.mulf %142, %146 : vector<16x32xf32>
    %148 = vector.broadcast %11 : vector<1x32xf32> to vector<16x32xf32>
    %149 = arith.mulf %147, %148 : vector<16x32xf32>
    %150 = vector.broadcast %12 : vector<1x32xf32> to vector<16x32xf32>
    %151 = arith.addf %149, %150 : vector<16x32xf32>
    %152 = vector.shape_cast %151 : vector<16x32xf32> to vector<2x8x32xf32>
    %c0_45 = arith.constant 0 : index
    %c0_46 = arith.constant 0 : index
    %c0_47 = arith.constant 0 : index
    %153 = vector.load %arg9[%c0_45, %c0_46, %c0_47] : memref<2x8x32xf32, #tpu.memory_space<vmem>>, vector<2x8x32xf32>
    tpu.vector_store %arg9[%c0_45, %c0_46, %c0_47], %152 {strides = array<i32>} : memref<2x8x32xf32, #tpu.memory_space<vmem>>, vector<2x8x32xf32>,
    return
  }
  func.func @transform_0(%arg0: i32, %arg1: i32) -> (i32, i32, i32) {
    %c0_i32 = arith.constant 0 : i32
    %c0_i32_0 = arith.constant 0 : i32
    %c0_i32_1 = arith.constant 0 : i32
    return %arg0, %c0_i32, %c0_i32_0 : i32, i32, i32
  }
  func.func @transform_1(%arg0: i32, %arg1: i32) -> (i32, i32, i32) {
    %c0_i32 = arith.constant 0 : i32
    %c0_i32_0 = arith.constant 0 : i32
    %c0_i32_1 = arith.constant 0 : i32
    return %arg0, %c0_i32, %c0_i32_0 : i32, i32, i32
  }
  func.func @transform_2(%arg0: i32, %arg1: i32) -> (i32, i32, i32) {
    %c0_i32 = arith.constant 0 : i32
    %c0_i32_0 = arith.constant 0 : i32
    %c0_i32_1 = arith.constant 0 : i32
    return %arg1, %c0_i32, %c0_i32_0 : i32, i32, i32
  }
  func.func @transform_3(%arg0: i32, %arg1: i32) -> (i32, i32, i32) {
    %c0_i32 = arith.constant 0 : i32
    %c0_i32_0 = arith.constant 0 : i32
    %c0_i32_1 = arith.constant 0 : i32
    return %arg1, %c0_i32, %c0_i32_0 : i32, i32, i32
  }
  func.func @transform_4(%arg0: i32, %arg1: i32) -> (i32, i32, i32) {
    %c0_i32 = arith.constant 0 : i32
    %c0_i32_0 = arith.constant 0 : i32
    %c0_i32_1 = arith.constant 0 : i32
    return %arg1, %c0_i32, %c0_i32_0 : i32, i32, i32
  }
  func.func @transform_5(%arg0: i32, %arg1: i32) -> (i32, i32, i32) {
    %c0_i32 = arith.constant 0 : i32
    %c0_i32_0 = arith.constant 0 : i32
    %c0_i32_1 = arith.constant 0 : i32
    return %arg1, %c0_i32, %c0_i32_0 : i32, i32, i32
  }
  func.func @transform_6(%arg0: i32, %arg1: i32) -> (i32, i32, i32) {
    %c0_i32 = arith.constant 0 : i32
    %c0_i32_0 = arith.constant 0 : i32
    %c0_i32_1 = arith.constant 0 : i32
    return %arg1, %c0_i32, %c0_i32_0 : i32, i32, i32
  }
  func.func @transform_7(%arg0: i32, %arg1: i32) -> (i32, i32, i32) {
    %c0_i32 = arith.constant 0 : i32
    %c0_i32_0 = arith.constant 0 : i32
    %c0_i32_1 = arith.constant 0 : i32
    return %arg0, %c0_i32, %c0_i32_0 : i32, i32, i32
  }
}

</mosaic_0001>

<llo_original>
// kernel: tpu_custom_call.1
$region0: #{tpu_custom_call.1}
  #allocation0 [shape = 'u32[]', space=smem, size = 0x4, offset = 0x4, fixed_abs, tag = 'smem constant byte address 0x4 - core index']
  #allocation1 [shape = 'u32[144,128]{1,0:T(1,128)}', space=vmem, size = 0x12000, scoped, tag = 'internal scratch']
  %s0 = inlined_call_operand.vmem [shape: f32[2,8,32], index: 0, kind: input, shape index: {}]
  %s1 = inlined_call_operand.vmem [shape: f32[2,1,8], index: 1, kind: input, shape index: {}]
  %s2 = inlined_call_operand.vmem [shape: bf16[2,32,192], index: 2, kind: input, shape index: {}]
  %s3 = inlined_call_operand.vmem [shape: bf16[2,64,32], index: 3, kind: input, shape index: {}]
  %s4 = inlined_call_operand.vmem [shape: bf16[2,32,64], index: 4, kind: input, shape index: {}]
  %s5 = inlined_call_operand.vmem [shape: bf16[2,64,32], index: 5, kind: input, shape index: {}]
  %s6 = inlined_call_operand.vmem [shape: f32[2,8,256], index: 6, kind: input, shape index: {}]
  %s7 = inlined_call_operand.hbm [shape: f32[2,8,32], index: 7, kind: output, shape index: {}]
  %s8 = sld [smem:[#allocation0]]
  $region65: #{tpu_custom_call.1} parent=0
    _
  %s10 = ssub.s32 1, %s8
  %s11 = scalar_select 0, %s10, %s8
  $region1: #{tpu_custom_call.1} parent=0
    #allocation2 [shape = 'u8[8192]{0}', space=vmem, size = 0x2000, scoped, tag = 'output window, operand 0, single buffered']
    #allocation3 [shape = 's32[2]{0}', space=sflag, size = 0x8, scoped, tag = 'scoped memory for tpu_custom_call.1']
    %12 = vsyncpa [#allocation3], 0
    loop: start=0, step=1, limit=4
    $region2: #{tpu_custom_call.1} parent=1 // loop_pre_header
      _
    $region3: #{tpu_custom_call.1} parent=1 // loop_header
      %s14 = sphi 0, %s18
      %p15 = scmp.ge.s32.totalorder %s14, 4
      %s21 = sphi 0, %s33
      %s22 = sphi 0, %s29
      %s23 = sphi 0, %s21
      %s24 = sphi 0, %s22
      %s25 = sphi 0, %s23
      %s26 = sphi 0, %s24
      %s36 = sphi 0, %s38
      %s39 = sphi 0, %s36
      %s40 = sphi 0, %s39
      %s56 = sphi 0, %s40
      %s62 = sphi 0, %s64
      %s65 = sphi 0, %s62
      %s66 = sphi 0, %s65
      %s82 = sphi 0, %s66
      %s88 = sphi 0, %s90
      %s91 = sphi 0, %s88
      %s92 = sphi 0, %s91
      %s108 = sphi 0, %s92
      %s114 = sphi 0, %s116
      %s117 = sphi 0, %s114
      %s118 = sphi 0, %s117
      %s134 = sphi 0, %s118
      %s140 = sphi 0, %s142
      %s143 = sphi 0, %s140
      %s144 = sphi 0, %s143
      %s160 = sphi 0, %s144
      %s166 = sphi 0, %s168
      %s169 = sphi 0, %s166
      %s170 = sphi 0, %s169
      %s186 = sphi 0, %s170
      %s192 = sphi 0, %s194
      %s195 = sphi 0, %s192
      %s196 = sphi 0, %s195
      %s212 = sphi 0, %s196
      %s218 = sphi 0, %s220
      %s221 = sphi 0, %s218
      %s222 = sphi 0, %s221
      %s238 = sphi 0, %s222
    $region4: #{tpu_custom_call.1} parent=1 // loop_header_branch
      %17 = sbr.rel (%p15) target = $region8
    $region5: #{tpu_custom_call.1} parent=1 // loop_body
      %s19 = ssub.s32 %s14, 1
      %s20 = ssub.s32 %s14, 2
      %s27 = sadd.s32 1, %s22
      %p28 = scmp.ge.s32.totalorder %s27, 2
      %s29 = scalar_select %p28, 0, %s27
      %s30 = sadd.s32 1, %s21
      %s31 = scalar_select %p28, %s30, %s21
      %p32 = scmp.ge.s32.totalorder %s31, 1
      %s33 = scalar_select %p32, 0, %s31
      %s34 = ssub.s32 %s21, %s33
      %p35 = scmp.eq.s32.totalorder %s34, 0
      %s37 = sadd.s32 %s36, 1
      %s38 = scalar_select %p35, %s36, %s37
      %p41 = pneg %p35
      %p42 = scmp.eq.s32.totalorder %s14, 1
      %p43 = por %p41, %p42
      %p44 = scmp.ne.s32.totalorder %s36, %s39
      %p45 = scmp.eq.s32.totalorder %s14, 0
      %p46 = por %p44, %p45
      %p47 = scmp.ne.s32.totalorder %s36, %s39
      %p48 = scmp.eq.s32.totalorder %s19, 1
      %p49 = por %p47, %p48
      %p50 = scmp.ne.s32.totalorder %s39, %s40
      %p51 = scmp.eq.s32.totalorder %s19, 0
      %p52 = por %p50, %p51
      %p53 = scmp.ne.s32.totalorder %s39, %s40
      %p54 = scmp.eq.s32.totalorder %s20, 1
      %p55 = por %p53, %p54
      %p57 = scmp.ne.s32.totalorder %s40, %s56
      %p58 = scmp.eq.s32.totalorder %s20, 0
      %p59 = por %p57, %p58
      %s60 = ssub.s32 %s21, %s33
      %p61 = scmp.eq.s32.totalorder %s60, 0
      %s63 = sadd.s32 %s62, 1
      %s64 = scalar_select %p61, %s62, %s63
      %p67 = pneg %p61
      %p68 = scmp.eq.s32.totalorder %s14, 1
      %p69 = por %p67, %p68
      %p70 = scmp.ne.s32.totalorder %s62, %s65
      %p71 = scmp.eq.s32.totalorder %s14, 0
      %p72 = por %p70, %p71
      %p73 = scmp.ne.s32.totalorder %s62, %s65
      %p74 = scmp.eq.s32.totalorder %s19, 1
      %p75 = por %p73, %p74
      %p76 = scmp.ne.s32.totalorder %s65, %s66
      %p77 = scmp.eq.s32.totalorder %s19, 0
      %p78 = por %p76, %p77
      %p79 = scmp.ne.s32.totalorder %s65, %s66
      %p80 = scmp.eq.s32.totalorder %s20, 1
      %p81 = por %p79, %p80
      %p83 = scmp.ne.s32.totalorder %s66, %s82
      %p84 = scmp.eq.s32.totalorder %s20, 0
      %p85 = por %p83, %p84
      %s86 = ssub.s32 %s22, %s29
      %p87 = scmp.eq.s32.totalorder %s86, 0
      %s89 = sadd.s32 %s88, 1
      %s90 = scalar_select %p87, %s88, %s89
      %p93 = pneg %p87
      %p94 = scmp.eq.s32.totalorder %s14, 1
      %p95 = por %p93, %p94
      %p96 = scmp.ne.s32.totalorder %s88, %s91
      %p97 = scmp.eq.s32.totalorder %s14, 0
      %p98 = por %p96, %p97
      %p99 = scmp.ne.s32.totalorder %s88, %s91
      %p100 = scmp.eq.s32.totalorder %s19, 1
      %p101 = por %p99, %p100
      %p102 = scmp.ne.s32.totalorder %s91, %s92
      %p103 = scmp.eq.s32.totalorder %s19, 0
      %p104 = por %p102, %p103
      %p105 = scmp.ne.s32.totalorder %s91, %s92
      %p106 = scmp.eq.s32.totalorder %s20, 1
      %p107 = por %p105, %p106
      %p109 = scmp.ne.s32.totalorder %s92, %s108
      %p110 = scmp.eq.s32.totalorder %s20, 0
      %p111 = por %p109, %p110
      %s112 = ssub.s32 %s22, %s29
      %p113 = scmp.eq.s32.totalorder %s112, 0
      %s115 = sadd.s32 %s114, 1
      %s116 = scalar_select %p113, %s114, %s115
      %p119 = pneg %p113
      %p120 = scmp.eq.s32.totalorder %s14, 1
      %p121 = por %p119, %p120
      %p122 = scmp.ne.s32.totalorder %s114, %s117
      %p123 = scmp.eq.s32.totalorder %s14, 0
      %p124 = por %p122, %p123
      %p125 = scmp.ne.s32.totalorder %s114, %s117
      %p126 = scmp.eq.s32.totalorder %s19, 1
      %p127 = por %p125, %p126
      %p128 = scmp.ne.s32.totalorder %s117, %s118
      %p129 = scmp.eq.s32.totalorder %s19, 0
      %p130 = por %p128, %p129
      %p131 = scmp.ne.s32.totalorder %s117, %s118
      %p132 = scmp.eq.s32.totalorder %s20, 1
      %p133 = por %p131, %p132
      %p135 = scmp.ne.s32.totalorder %s118, %s134
      %p136 = scmp.eq.s32.totalorder %s20, 0
      %p137 = por %p135, %p136
      %s138 = ssub.s32 %s22, %s29
      %p139 = scmp.eq.s32.totalorder %s138, 0
      %s141 = sadd.s32 %s140, 1
      %s142 = scalar_select %p139, %s140, %s141
      %p145 = pneg %p139
      %p146 = scmp.eq.s32.totalorder %s14, 1
      %p147 = por %p145, %p146
      %p148 = scmp.ne.s32.totalorder %s140, %s143
      %p149 = scmp.eq.s32.totalorder %s14, 0
      %p150 = por %p148, %p149
      %p151 = scmp.ne.s32.totalorder %s140, %s143
      %p152 = scmp.eq.s32.totalorder %s19, 1
      %p153 = por %p151, %p152
      %p154 = scmp.ne.s32.totalorder %s143, %s144
      %p155 = scmp.eq.s32.totalorder %s19, 0
      %p156 = por %p154, %p155
      %p157 = scmp.ne.s32.totalorder %s143, %s144
      %p158 = scmp.eq.s32.totalorder %s20, 1
      %p159 = por %p157, %p158
      %p161 = scmp.ne.s32.totalorder %s144, %s160
      %p162 = scmp.eq.s32.totalorder %s20, 0
      %p163 = por %p161, %p162
      %s164 = ssub.s32 %s22, %s29
      %p165 = scmp.eq.s32.totalorder %s164, 0
      %s167 = sadd.s32 %s166, 1
      %s168 = scalar_select %p165, %s166, %s167
      %p171 = pneg %p165
      %p172 = scmp.eq.s32.totalorder %s14, 1
      %p173 = por %p171, %p172
      %p174 = scmp.ne.s32.totalorder %s166, %s169
      %p175 = scmp.eq.s32.totalorder %s14, 0
      %p176 = por %p174, %p175
      %p177 = scmp.ne.s32.totalorder %s166, %s169
      %p178 = scmp.eq.s32.totalorder %s19, 1
      %p179 = por %p177, %p178
      %p180 = scmp.ne.s32.totalorder %s169, %s170
      %p181 = scmp.eq.s32.totalorder %s19, 0
      %p182 = por %p180, %p181
      %p183 = scmp.ne.s32.totalorder %s169, %s170
      %p184 = scmp.eq.s32.totalorder %s20, 1
      %p185 = por %p183, %p184
      %p187 = scmp.ne.s32.totalorder %s170, %s186
      %p188 = scmp.eq.s32.totalorder %s20, 0
      %p189 = por %p187, %p188
      %s190 = ssub.s32 %s22, %s29
      %p191 = scmp.eq.s32.totalorder %s190, 0
      %s193 = sadd.s32 %s192, 1
      %s194 = scalar_select %p191, %s192, %s193
      %p197 = pneg %p191
      %p198 = scmp.eq.s32.totalorder %s14, 1
      %p199 = por %p197, %p198
      %p200 = scmp.ne.s32.totalorder %s192, %s195
      %p201 = scmp.eq.s32.totalorder %s14, 0
      %p202 = por %p200, %p201
      %p203 = scmp.ne.s32.totalorder %s192, %s195
      %p204 = scmp.eq.s32.totalorder %s19, 1
      %p205 = por %p203, %p204
      %p206 = scmp.ne.s32.totalorder %s195, %s196
      %p207 = scmp.eq.s32.totalorder %s19, 0
      %p208 = por %p206, %p207
      %p209 = scmp.ne.s32.totalorder %s195, %s196
      %p210 = scmp.eq.s32.totalorder %s20, 1
      %p211 = por %p209, %p210
      %p213 = scmp.ne.s32.totalorder %s196, %s212
      %p214 = scmp.eq.s32.totalorder %s20, 0
      %p215 = por %p213, %p214
      %s216 = ssub.s32 %s21, %s33
      %p217 = scmp.eq.s32.totalorder %s216, 0
      %s219 = sadd.s32 %s218, 1
      %s220 = scalar_select %p217, %s218, %s219
      %p223 = pneg %p217
      %p224 = scmp.eq.s32.totalorder %s14, 1
      %p225 = por %p223, %p224
      %p226 = scmp.ne.s32.totalorder %s218, %s221
      %p227 = scmp.eq.s32.totalorder %s14, 0
      %p228 = por %p226, %p227
      %p229 = scmp.ne.s32.totalorder %s218, %s221
      %p230 = scmp.eq.s32.totalorder %s19, 1
      %p231 = por %p229, %p230
      %p232 = scmp.ne.s32.totalorder %s221, %s222
      %p233 = scmp.eq.s32.totalorder %s19, 0
      %p234 = por %p232, %p233
      %p235 = scmp.ne.s32.totalorder %s221, %s222
      %p236 = scmp.eq.s32.totalorder %s20, 1
      %p237 = por %p235, %p236
      %p239 = scmp.ne.s32.totalorder %s222, %s238
      %p240 = scmp.eq.s32.totalorder %s20, 0
      %p241 = por %p239, %p240
      %p242 = scmp.le.s32.totalorder 1, %s14
      %p243 = scmp.lt.s32.totalorder %s14, 3
      %p244 = pnand %p242, %p243
      %p245 = pneg %p244
      // Predicated region
      $region9: #{tpu_custom_call.1} parent=5 // pred_check
        _
      $region10: #{tpu_custom_call.1} parent=5 // pred_check_branch
        %247 = sbr.rel (%p244) target = $region12
      $region11: #{tpu_custom_call.1} parent=5 // pred_region
        %s248 = ssub.s32 %s14, 1
        // Predicated region
        $region13: #{tpu_custom_call.1} parent=11 // pred_check
          %p249 = pneg %p52
        $region14: #{tpu_custom_call.1} parent=11 // pred_check_branch
          %251 = sbr.rel (%p249) target = $region16
        $region15: #{tpu_custom_call.1} parent=11 // pred_region
          %s252 = smul.u32 2, %s23
          %p253 = scmp.lt.s32.totalorder %s252, 1
          %s254 = scalar_select %p253, %s252, 1
          %s255 = smul.addr %s254, 8
          %s256 = scalar_lea.vmem %s0, %s255
          %s257 = smul.u32 2, %s23
        $region16: #{tpu_custom_call.1} parent=11 // pred_fallthru
          _
        // Predicated region
        $region17: #{tpu_custom_call.1} parent=11 // pred_check
          %p258 = pneg %p78
        $region18: #{tpu_custom_call.1} parent=11 // pred_check_branch
          %260 = sbr.rel (%p258) target = $region20
        $region19: #{tpu_custom_call.1} parent=11 // pred_region
          %s261 = smul.u32 2, %s23
          %p262 = scmp.lt.s32.totalorder %s261, 1
          %s263 = scalar_select %p262, %s261, 1
          %s264 = scalar_lea.vmem %s1, %s263
          %s265 = smul.u32 2, %s23
        $region20: #{tpu_custom_call.1} parent=11 // pred_fallthru
          _
      $region12: #{tpu_custom_call.1} parent=5 // pred_fallthru
        _
      %p266 = scmp.lt.s32.totalorder %s14, 2
      // Predicated region
      $region21: #{tpu_custom_call.1} parent=5 // pred_check
        %p267 = pneg %p266
      $region22: #{tpu_custom_call.1} parent=5 // pred_check_branch
        %269 = sbr.rel (%p267) target = $region24
      $region23: #{tpu_custom_call.1} parent=5 // pred_region
        // Predicated region
        $region25: #{tpu_custom_call.1} parent=23 // pred_check
          %p270 = pneg %p98
        $region26: #{tpu_custom_call.1} parent=23 // pred_check_branch
          %272 = sbr.rel (%p270) target = $region28
        $region27: #{tpu_custom_call.1} parent=23 // pred_region
          %p273 = scmp.lt.s32.totalorder %s22, 1
          %s274 = scalar_select %p273, %s22, 1
          %s275 = smul.addr %s274, 8
          %s276 = smul.addr %s275, 4
          %s277 = scalar_lea.vmem %s2, %s276
        $region28: #{tpu_custom_call.1} parent=23 // pred_fallthru
          _
        // Predicated region
        $region29: #{tpu_custom_call.1} parent=23 // pred_check
          %p278 = pneg %p124
        $region30: #{tpu_custom_call.1} parent=23 // pred_check_branch
          %280 = sbr.rel (%p278) target = $region32
        $region31: #{tpu_custom_call.1} parent=23 // pred_region
          %p281 = scmp.lt.s32.totalorder %s22, 1
          %s282 = scalar_select %p281, %s22, 1
          %s283 = smul.addr %s282, 8
          %s284 = smul.addr %s283, 4
          %s285 = scalar_lea.vmem %s3, %s284
        $region32: #{tpu_custom_call.1} parent=23 // pred_fallthru
          _
        // Predicated region
        $region33: #{tpu_custom_call.1} parent=23 // pred_check
          %p286 = pneg %p150
        $region34: #{tpu_custom_call.1} parent=23 // pred_check_branch
          %288 = sbr.rel (%p286) target = $region36
        $region35: #{tpu_custom_call.1} parent=23 // pred_region
          %p289 = scmp.lt.s32.totalorder %s22, 1
          %s290 = scalar_select %p289, %s22, 1
          %s291 = smul.addr %s290, 4
          %s292 = smul.addr %s291, 4
          %s293 = scalar_lea.vmem %s4, %s292
        $region36: #{tpu_custom_call.1} parent=23 // pred_fallthru
          _
        // Predicated region
        $region37: #{tpu_custom_call.1} parent=23 // pred_check
          %p294 = pneg %p176
        $region38: #{tpu_custom_call.1} parent=23 // pred_check_branch
          %296 = sbr.rel (%p294) target = $region40
        $region39: #{tpu_custom_call.1} parent=23 // pred_region
          %p297 = scmp.lt.s32.totalorder %s22, 1
          %s298 = scalar_select %p297, %s22, 1
          %s299 = smul.addr %s298, 8
          %s300 = smul.addr %s299, 4
          %s301 = scalar_lea.vmem %s5, %s300
        $region40: #{tpu_custom_call.1} parent=23 // pred_fallthru
          _
        // Predicated region
        $region41: #{tpu_custom_call.1} parent=23 // pred_check
          %p302 = pneg %p202
        $region42: #{tpu_custom_call.1} parent=23 // pred_check_branch
          %304 = sbr.rel (%p302) target = $region44
        $region43: #{tpu_custom_call.1} parent=23 // pred_region
          %p305 = scmp.lt.s32.totalorder %s22, 1
          %s306 = scalar_select %p305, %s22, 1
          %s307 = smul.addr %s306, 2
          %s308 = smul.addr %s307, 8
          %s309 = scalar_lea.vmem %s6, %s308
        $region44: #{tpu_custom_call.1} parent=23 // pred_fallthru
          _
      $region24: #{tpu_custom_call.1} parent=5 // pred_fallthru
        _
      %p310 = scmp.le.s32.totalorder 1, %s14
      %p311 = scmp.lt.s32.totalorder %s14, 3
      %p312 = pnand %p310, %p311
      %p313 = pneg %p312
      // Predicated region
      $region45: #{tpu_custom_call.1} parent=5 // pred_check
        _
      $region46: #{tpu_custom_call.1} parent=5 // pred_check_branch
        %315 = sbr.rel (%p312) target = $region48
      $region47: #{tpu_custom_call.1} parent=5 // pred_region
        %s316 = ssub.s32 %s14, 1
        %s317 = smul.u32 2, %s23
        %p318 = scmp.lt.s32.totalorder %s317, 1
        %s319 = scalar_select %p318, %s317, 1
        %s320 = smul.addr %s319, 8
        %s321 = scalar_lea.vmem %s0, %s320
        %p322 = pneg %p52
        %p323 = pneg %p49
        %s324 = smul.u32 2, %s23
        %p325 = scmp.lt.s32.totalorder %s324, 1
        %s326 = scalar_select %p325, %s324, 1
        %s327 = scalar_lea.vmem %s1, %s326
        %p328 = pneg %p78
        %p329 = pneg %p75
        %p330 = scmp.lt.s32.totalorder %s24, 1
        %s331 = scalar_select %p330, %s24, 1
        %s332 = smul.addr %s331, 8
        %s333 = smul.addr %s332, 4
        %s334 = scalar_lea.vmem %s2, %s333
        %p335 = pneg %p104
        %p336 = pneg %p101
        %p337 = scmp.lt.s32.totalorder %s24, 1
        %s338 = scalar_select %p337, %s24, 1
        %s339 = smul.addr %s338, 8
        %s340 = smul.addr %s339, 4
        %s341 = scalar_lea.vmem %s3, %s340
        %p342 = pneg %p130
        %p343 = pneg %p127
        %p344 = scmp.lt.s32.totalorder %s24, 1
        %s345 = scalar_select %p344, %s24, 1
        %s346 = smul.addr %s345, 4
        %s347 = smul.addr %s346, 4
        %s348 = scalar_lea.vmem %s4, %s347
        %p349 = pneg %p156
        %p350 = pneg %p153
        %p351 = scmp.lt.s32.totalorder %s24, 1
        %s352 = scalar_select %p351, %s24, 1
        %s353 = smul.addr %s352, 8
        %s354 = smul.addr %s353, 4
        %s355 = scalar_lea.vmem %s5, %s354
        %p356 = pneg %p182
        %p357 = pneg %p179
        %p358 = scmp.lt.s32.totalorder %s24, 1
        %s359 = scalar_select %p358, %s24, 1
        %s360 = smul.addr %s359, 2
        %s361 = smul.addr %s360, 8
        %s362 = scalar_lea.vmem %s6, %s361
        %p363 = pneg %p208
        %p364 = pneg %p205
        %p365 = pneg %p234
        %p366 = pneg %p231
        %s367 = smul.u32 2, %s23
        %p368 = scmp.lt.s32.totalorder %s367, 1
        %s369 = scalar_select %p368, %s367, 1
        %s370 = smul.addr %s369, 8
        %s371 = scalar_lea.vmem %s0, %s370
        %s372 = smul.u32 2, %s23
        %s373 = smul.u32 2, %s23
        %p374 = scmp.lt.s32.totalorder %s373, 1
        %s375 = scalar_select %p374, %s373, 1
        %s376 = scalar_lea.vmem %s1, %s375
        %s377 = smul.u32 2, %s23
        %p378 = scmp.lt.s32.totalorder %s24, 1
        %s379 = scalar_select %p378, %s24, 1
        %s380 = smul.addr %s379, 8
        %s381 = smul.addr %s380, 4
        %s382 = scalar_lea.vmem %s2, %s381
        %p383 = scmp.lt.s32.totalorder %s24, 1
        %s384 = scalar_select %p383, %s24, 1
        %s385 = smul.addr %s384, 8
        %s386 = smul.addr %s385, 4
        %s387 = scalar_lea.vmem %s3, %s386
        %p388 = scmp.lt.s32.totalorder %s24, 1
        %s389 = scalar_select %p388, %s24, 1
        %s390 = smul.addr %s389, 4
        %s391 = smul.addr %s390, 4
        %s392 = scalar_lea.vmem %s4, %s391
        %p393 = scmp.lt.s32.totalorder %s24, 1
        %s394 = scalar_select %p393, %s24, 1
        %s395 = smul.addr %s394, 8
        %s396 = smul.addr %s395, 4
        %s397 = scalar_lea.vmem %s5, %s396
        %p398 = scmp.lt.s32.totalorder %s24, 1
        %s399 = scalar_select %p398, %s24, 1
        %s400 = smul.addr %s399, 2
        %s401 = smul.addr %s400, 8
        %s402 = scalar_lea.vmem %s6, %s401
        %s403 = smul.u32 2, %s23
        %p405 = scmp.eq.s32.totalorder %s24, 0
        // Predicated region
        $region49: #{tpu_custom_call.1} parent=47 // pred_check
          %p406 = pneg %p405
        $region50: #{tpu_custom_call.1} parent=47 // pred_check_branch
          %408 = sbr.rel (%p406) target = $region52
        $region51: #{tpu_custom_call.1} parent=47 // pred_region
          %v409 = vld [vmem:[%s371] sm:$0xff]
          %v410 = vld [vmem:[%s371 + $0x8] sm:$0xff]
          %vm411 = vcmask 261120
          %412 = vst.msk [vmem:[#allocation2] sm:$0xff] %vm411, %v409
          %413 = vst.msk [vmem:[#allocation2 + $0x8] sm:$0xff] %vm411, %v410
        $region52: #{tpu_custom_call.1} parent=47 // pred_fallthru
          _
        %v414 = vld [vmem:[%s402] sm:$0xff]
        %v415 = vld [vmem:[%s402 + $0x8] sm:$0xff]
        %v416 = vld [vmem:[#allocation2] sm:$0xff]
        %v417 = vld [vmem:[#allocation2 + $0x8] sm:$0xff]
        %v418 = vpack.c.bf16 %v417, %v416
        %v419 = vld [vmem:[%s382] sm:$0xff]
        %v420 = vld [vmem:[%s382 + $0x8] sm:$0xff]
        %v421 = vld [vmem:[%s382 + $0x10] sm:$0xff]
        %v422 = vld [vmem:[%s382 + $0x18] sm:$0xff]
        %v423 = vlaneseq
        %v424 = vshrl.u32 %v423, 7
        %v425 = vsub.s32 0, %v424
        %v426 = vrot.slane %v414, %v425
        %v427 = vlaneseq
        %v428 = vshrl.u32 %v427, 7
        %v429 = vsub.s32 0, %v428
        %v430 = vrot.slane %v415, %v429
        %v435 = vunpack.c.l.b16 %v419
        %v436 = vunpack.c.h.b16 %v419
        %v437 = vunpack.c.l.b16 %v420
        %v438 = vunpack.c.h.b16 %v420
        %v439 = vunpack.c.l.b16 %v421
        %v440 = vunpack.c.h.b16 %v421
        %v441 = vunpack.c.l.b16 %v422
        %v442 = vunpack.c.h.b16 %v422
        %v443 = vpack.c.b16 %v437, %v435
        %v444 = vpack.c.b16 %v438, %v436
        %v445 = vpack.c.b16 %v441, %v439
        %v446 = vpack.c.b16 %v442, %v440
        %vm451 = vcmask 261120
        %v453 = vsel %vm451, %v418, 0
        %455 = vmatprep.subr.bf16.mxu0 0
        %456 = vmatpush1.bf16.msra.mxu0 0
        %457 = vmatprep.subr.bf16.mxu0 0
        %458 = vmatpush1.bf16.msra.mxu0 0
        %459 = vmatprep.subr.bf16.mxu0 0
        %460 = vmatpush1.bf16.msra.mxu0 0
        %461 = vmatprep.subr.bf16.mxu0 0
        %462 = vmatpush1.bf16.msra.mxu0 0
        %463 = vmatprep.subr.bf16.mxu0 0
        %464 = vmatpush1.bf16.msra.mxu0 0
        %465 = vmatprep.subr.bf16.mxu0 0
        %466 = vmatpush1.bf16.msra.mxu0 0
        %467 = vmatprep.subr.bf16.mxu0 %v446
        %468 = vmatpush1.bf16.msra.mxu0 %v445
        %469 = vmatprep.subr.bf16.mxu0 %v444
        %470 = vmatpush1.bf16.msra.mxu0 %v443
        %471 = vmatprep.subr.bf16.mxu0 0
        %472 = vmatpush2.bf16.msra.mxu0 0
        %473 = vmatprep.subr.bf16.mxu0 0
        %474 = vmatpush2.bf16.msra.mxu0 0
        %475 = vmatprep.subr.bf16.mxu0 0
        %476 = vmatpush2.bf16.msra.mxu0 0
        %477 = vmatprep.subr.bf16.mxu0 0
        %478 = vmatpush2.bf16.msra.mxu0 0
        %479 = vmatprep.subr.bf16.mxu0 0
        %480 = vmatpush2.bf16.msra.mxu0 0
        %481 = vmatprep.subr.bf16.mxu0 0
        %482 = vmatpush2.bf16.msra.mxu0 0
        %483 = vmatprep.subr.bf16.mxu0 0
        %484 = vmatpush2.bf16.msra.mxu0 0
        %485 = vmatprep.subr.bf16.mxu0 0
        %486 = vmatpush2.bf16.msra.mxu0 0
        %487 = vmatprep.mubr.bf16.mxu0 0
        %488 = vmatmul.mubr.bf16.gmra.mxu0 %v453
        %v489 = vpop.f32.mrf.mxu0
        %v490 = vadd.f32 %v426, %v489
        %v491 = vpop.f32.mrf.mxu0
        %v492 = vadd.f32 %v430, %v491
        %v493 = vpop.f32.mrf.mxu0
        %v494 = vadd.f32 %v426, %v493
        %v495 = vpop.f32.mrf.mxu0
        %v496 = vadd.f32 %v430, %v495
        %497 = vdwg.mxu0
        %499 = vrot.lane.b32.xlu0 %v490, 112
        %v500 = vpop.permute.xlu0 %499
        %502 = vrot.lane.b32.xlu0 %v490, 96
        %v503 = vpop.permute.xlu0 %502
        %505 = vrot.lane.b32.xlu0 %v490, 80
        %v506 = vpop.permute.xlu0 %505
        %v508 = vcombine.low %v490, %v503
        %v509 = vcombine.high %v490, %v503
        %v511 = vunpack.c.l.s4 1983009808
        %v512 = vunpack.c.0.s8 %v511
        %v513 = vlaneseq
        %v514 = vshrl.u32 %v513, 7
        %v515 = vsub.s32 %v512, %v514
        %v516 = vrot.slane %v508, %v515
        %v518 = vunpack.c.l.s4 1983009808
        %v519 = vunpack.c.0.s8 %v518
        %v520 = vlaneseq
        %v521 = vshrl.u32 %v520, 7
        %v522 = vsub.s32 %v519, %v521
        %v523 = vrot.slane %v509, %v522
        %v524 = vcombine.low %v500, %v506
        %v525 = vcombine.high %v500, %v506
        %v527 = vunpack.c.l.s4 1983009808
        %v528 = vunpack.c.0.s8 %v527
        %v529 = vlaneseq
        %v530 = vshrl.u32 %v529, 7
        %v531 = vsub.s32 %v528, %v530
        %v532 = vrot.slane %v524, %v531
        %v534 = vunpack.c.l.s4 1983009808
        %v535 = vunpack.c.0.s8 %v534
        %v536 = vlaneseq
        %v537 = vshrl.u32 %v536, 7
        %v538 = vsub.s32 %v535, %v537
        %v539 = vrot.slane %v525, %v538
        %v540 = vcombine.low %v516, %v532
        %v541 = vcombine.high %v516, %v532
        %v543 = vunpack.c.l.s4 1934713408
        %v544 = vunpack.c.0.s8 %v543
        %v545 = vlaneseq
        %v546 = vshrl.u32 %v545, 7
        %v547 = vsub.s32 %v544, %v546
        %v548 = vrot.slane %v540, %v547
        %v550 = vunpack.c.l.s4 1934713408
        %v551 = vunpack.c.0.s8 %v550
        %v552 = vlaneseq
        %v553 = vshrl.u32 %v552, 7
        %v554 = vsub.s32 %v551, %v553
        %v555 = vrot.slane %v541, %v554
        %v556 = vcombine.low %v523, %v539
        %v557 = vcombine.high %v523, %v539
        %v559 = vunpack.c.l.s4 1934713408
        %v560 = vunpack.c.0.s8 %v559
        %v561 = vlaneseq
        %v562 = vshrl.u32 %v561, 7
        %v563 = vsub.s32 %v560, %v562
        %v564 = vrot.slane %v556, %v563
        %v566 = vunpack.c.l.s4 1934713408
        %v567 = vunpack.c.0.s8 %v566
        %v568 = vlaneseq
        %v569 = vshrl.u32 %v568, 7
        %v570 = vsub.s32 %v567, %v569
        %v571 = vrot.slane %v557, %v570
        %v572 = vcombine.high %v548, 0.0
        %v573 = vcombine.high %v555, 0.0
        %v574 = vcombine.high %v564, 0.0
        %v575 = vcombine.high %v571, 0.0
        %v576 = vcombine.low %v548, %v555
        %v578 = vunpack.c.l.s4 1983009808
        %v579 = vunpack.c.0.s8 %v578
        %v580 = vlaneseq
        %v581 = vshrl.u32 %v580, 7
        %v582 = vsub.s32 %v579, %v581
        %v583 = vrot.slane %v576, %v582
        %v584 = vcombine.low %v572, %v573
        %v586 = vunpack.c.l.s4 1983009808
        %v587 = vunpack.c.0.s8 %v586
        %v588 = vlaneseq
        %v589 = vshrl.u32 %v588, 7
        %v590 = vsub.s32 %v587, %v589
        %v591 = vrot.slane %v584, %v590
        %v592 = vcombine.low %v564, %v571
        %v594 = vunpack.c.l.s4 1983009808
        %v595 = vunpack.c.0.s8 %v594
        %v596 = vlaneseq
        %v597 = vshrl.u32 %v596, 7
        %v598 = vsub.s32 %v595, %v597
        %v599 = vrot.slane %v592, %v598
        %v600 = vcombine.low %v574, %v575
        %v602 = vunpack.c.l.s4 1983009808
        %v603 = vunpack.c.0.s8 %v602
        %v604 = vlaneseq
        %v605 = vshrl.u32 %v604, 7
        %v606 = vsub.s32 %v603, %v605
        %v607 = vrot.slane %v600, %v606
        %v608 = vcombine.low %v583, %v591
        %v609 = vcombine.high %v583, %v591
        %v611 = vunpack.c.l.s4 1934713408
        %v612 = vunpack.c.0.s8 %v611
        %v613 = vlaneseq
        %v614 = vshrl.u32 %v613, 7
        %v615 = vsub.s32 %v612, %v614
        %v616 = vrot.slane %v608, %v615
        %v618 = vunpack.c.l.s4 1934713408
        %v619 = vunpack.c.0.s8 %v618
        %v620 = vlaneseq
        %v621 = vshrl.u32 %v620, 7
        %v622 = vsub.s32 %v619, %v621
        %v623 = vrot.slane %v609, %v622
        %v624 = vcombine.low %v599, %v607
        %v625 = vcombine.high %v599, %v607
        %v627 = vunpack.c.l.s4 1934713408
        %v628 = vunpack.c.0.s8 %v627
        %v629 = vlaneseq
        %v630 = vshrl.u32 %v629, 7
        %v631 = vsub.s32 %v628, %v630
        %v632 = vrot.slane %v624, %v631
        %v634 = vunpack.c.l.s4 1934713408
        %v635 = vunpack.c.0.s8 %v634
        %v636 = vlaneseq
        %v637 = vshrl.u32 %v636, 7
        %v638 = vsub.s32 %v635, %v637
        %v639 = vrot.slane %v625, %v638
        %v640 = vcombine.low %v616, %v632
        %v641 = vcombine.high %v616, %v632
        %v642 = vcombine.low %v623, %v639
        %v643 = vcombine.high %v623, %v639
        %644 = vrot.lane.b32.xlu0 %v490, 64
        %v645 = vpop.permute.xlu0 %644
        %646 = vrot.lane.b32.xlu0 %v500, 64
        %v647 = vpop.permute.xlu0 %646
        %648 = vrot.lane.b32.xlu0 %v503, 64
        %v649 = vpop.permute.xlu0 %648
        %650 = vrot.lane.b32.xlu0 %v506, 64
        %v651 = vpop.permute.xlu0 %650
        %v656 = vcombine.low %v645, %v649
        %v657 = vcombine.high %v645, %v649
        %v659 = vunpack.c.l.s4 1983009808
        %v660 = vunpack.c.0.s8 %v659
        %v661 = vlaneseq
        %v662 = vshrl.u32 %v661, 7
        %v663 = vsub.s32 %v660, %v662
        %v664 = vrot.slane %v656, %v663
        %v666 = vunpack.c.l.s4 1983009808
        %v667 = vunpack.c.0.s8 %v666
        %v668 = vlaneseq
        %v669 = vshrl.u32 %v668, 7
        %v670 = vsub.s32 %v667, %v669
        %v671 = vrot.slane %v657, %v670
        %v672 = vcombine.low %v647, %v651
        %v673 = vcombine.high %v647, %v651
        %v675 = vunpack.c.l.s4 1983009808
        %v676 = vunpack.c.0.s8 %v675
        %v677 = vlaneseq
        %v678 = vshrl.u32 %v677, 7
        %v679 = vsub.s32 %v676, %v678
        %v680 = vrot.slane %v672, %v679
        %v682 = vunpack.c.l.s4 1983009808
        %v683 = vunpack.c.0.s8 %v682
        %v684 = vlaneseq
        %v685 = vshrl.u32 %v684, 7
        %v686 = vsub.s32 %v683, %v685
        %v687 = vrot.slane %v673, %v686
        %v688 = vcombine.low %v664, %v680
        %v689 = vcombine.high %v664, %v680
        %v691 = vunpack.c.l.s4 1934713408
        %v692 = vunpack.c.0.s8 %v691
        %v693 = vlaneseq
        %v694 = vshrl.u32 %v693, 7
        %v695 = vsub.s32 %v692, %v694
        %v696 = vrot.slane %v688, %v695
        %v698 = vunpack.c.l.s4 1934713408
        %v699 = vunpack.c.0.s8 %v698
        %v700 = vlaneseq
        %v701 = vshrl.u32 %v700, 7
        %v702 = vsub.s32 %v699, %v701
        %v703 = vrot.slane %v689, %v702
        %v704 = vcombine.low %v671, %v687
        %v705 = vcombine.high %v671, %v687
        %v707 = vunpack.c.l.s4 1934713408
        %v708 = vunpack.c.0.s8 %v707
        %v709 = vlaneseq
        %v710 = vshrl.u32 %v709, 7
        %v711 = vsub.s32 %v708, %v710
        %v712 = vrot.slane %v704, %v711
        %v714 = vunpack.c.l.s4 1934713408
        %v715 = vunpack.c.0.s8 %v714
        %v716 = vlaneseq
        %v717 = vshrl.u32 %v716, 7
        %v718 = vsub.s32 %v715, %v717
        %v719 = vrot.slane %v705, %v718
        %v720 = vcombine.high %v696, 0.0
        %v721 = vcombine.high %v703, 0.0
        %v722 = vcombine.high %v712, 0.0
        %v723 = vcombine.high %v719, 0.0
        %v724 = vcombine.low %v696, %v703
        %v726 = vunpack.c.l.s4 1983009808
        %v727 = vunpack.c.0.s8 %v726
        %v728 = vlaneseq
        %v729 = vshrl.u32 %v728, 7
        %v730 = vsub.s32 %v727, %v729
        %v731 = vrot.slane %v724, %v730
        %v732 = vcombine.low %v720, %v721
        %v734 = vunpack.c.l.s4 1983009808
        %v735 = vunpack.c.0.s8 %v734
        %v736 = vlaneseq
        %v737 = vshrl.u32 %v736, 7
        %v738 = vsub.s32 %v735, %v737
        %v739 = vrot.slane %v732, %v738
        %v740 = vcombine.low %v712, %v719
        %v742 = vunpack.c.l.s4 1983009808
        %v743 = vunpack.c.0.s8 %v742
        %v744 = vlaneseq
        %v745 = vshrl.u32 %v744, 7
        %v746 = vsub.s32 %v743, %v745
        %v747 = vrot.slane %v740, %v746
        %v748 = vcombine.low %v722, %v723
        %v750 = vunpack.c.l.s4 1983009808
        %v751 = vunpack.c.0.s8 %v750
        %v752 = vlaneseq
        %v753 = vshrl.u32 %v752, 7
        %v754 = vsub.s32 %v751, %v753
        %v755 = vrot.slane %v748, %v754
        %v756 = vcombine.low %v731, %v739
        %v757 = vcombine.high %v731, %v739
        %v759 = vunpack.c.l.s4 1934713408
        %v760 = vunpack.c.0.s8 %v759
        %v761 = vlaneseq
        %v762 = vshrl.u32 %v761, 7
        %v763 = vsub.s32 %v760, %v762
        %v764 = vrot.slane %v756, %v763
        %v766 = vunpack.c.l.s4 1934713408
        %v767 = vunpack.c.0.s8 %v766
        %v768 = vlaneseq
        %v769 = vshrl.u32 %v768, 7
        %v770 = vsub.s32 %v767, %v769
        %v771 = vrot.slane %v757, %v770
        %v772 = vcombine.low %v747, %v755
        %v773 = vcombine.high %v747, %v755
        %v775 = vunpack.c.l.s4 1934713408
        %v776 = vunpack.c.0.s8 %v775
        %v777 = vlaneseq
        %v778 = vshrl.u32 %v777, 7
        %v779 = vsub.s32 %v776, %v778
        %v780 = vrot.slane %v772, %v779
        %v782 = vunpack.c.l.s4 1934713408
        %v783 = vunpack.c.0.s8 %v782
        %v784 = vlaneseq
        %v785 = vshrl.u32 %v784, 7
        %v786 = vsub.s32 %v783, %v785
        %v787 = vrot.slane %v773, %v786
        %v788 = vcombine.low %v764, %v780
        %v789 = vcombine.high %v764, %v780
        %v790 = vcombine.low %v771, %v787
        %v791 = vcombine.high %v771, %v787
        %793 = vrot.lane.b32.xlu0 %v492, 112
        %v794 = vpop.permute.xlu0 %793
        %796 = vrot.lane.b32.xlu0 %v492, 96
        %v797 = vpop.permute.xlu0 %796
        %799 = vrot.lane.b32.xlu0 %v492, 80
        %v800 = vpop.permute.xlu0 %799
        %v802 = vcombine.low %v492, %v797
        %v803 = vcombine.high %v492, %v797
        %v805 = vunpack.c.l.s4 1983009808
        %v806 = vunpack.c.0.s8 %v805
        %v807 = vlaneseq
        %v808 = vshrl.u32 %v807, 7
        %v809 = vsub.s32 %v806, %v808
        %v810 = vrot.slane %v802, %v809
        %v812 = vunpack.c.l.s4 1983009808
        %v813 = vunpack.c.0.s8 %v812
        %v814 = vlaneseq
        %v815 = vshrl.u32 %v814, 7
        %v816 = vsub.s32 %v813, %v815
        %v817 = vrot.slane %v803, %v816
        %v818 = vcombine.low %v794, %v800
        %v819 = vcombine.high %v794, %v800
        %v821 = vunpack.c.l.s4 1983009808
        %v822 = vunpack.c.0.s8 %v821
        %v823 = vlaneseq
        %v824 = vshrl.u32 %v823, 7
        %v825 = vsub.s32 %v822, %v824
        %v826 = vrot.slane %v818, %v825
        %v828 = vunpack.c.l.s4 1983009808
        %v829 = vunpack.c.0.s8 %v828
        %v830 = vlaneseq
        %v831 = vshrl.u32 %v830, 7
        %v832 = vsub.s32 %v829, %v831
        %v833 = vrot.slane %v819, %v832
        %v834 = vcombine.low %v810, %v826
        %v835 = vcombine.high %v810, %v826
        %v837 = vunpack.c.l.s4 1934713408
        %v838 = vunpack.c.0.s8 %v837
        %v839 = vlaneseq
        %v840 = vshrl.u32 %v839, 7
        %v841 = vsub.s32 %v838, %v840
        %v842 = vrot.slane %v834, %v841
        %v844 = vunpack.c.l.s4 1934713408
        %v845 = vunpack.c.0.s8 %v844
        %v846 = vlaneseq
        %v847 = vshrl.u32 %v846, 7
        %v848 = vsub.s32 %v845, %v847
        %v849 = vrot.slane %v835, %v848
        %v850 = vcombine.low %v817, %v833
        %v851 = vcombine.high %v817, %v833
        %v853 = vunpack.c.l.s4 1934713408
        %v854 = vunpack.c.0.s8 %v853
        %v855 = vlaneseq
        %v856 = vshrl.u32 %v855, 7
        %v857 = vsub.s32 %v854, %v856
        %v858 = vrot.slane %v850, %v857
        %v860 = vunpack.c.l.s4 1934713408
        %v861 = vunpack.c.0.s8 %v860
        %v862 = vlaneseq
        %v863 = vshrl.u32 %v862, 7
        %v864 = vsub.s32 %v861, %v863
        %v865 = vrot.slane %v851, %v864
        %v866 = vcombine.high %v842, 0.0
        %v867 = vcombine.high %v849, 0.0
        %v868 = vcombine.high %v858, 0.0
        %v869 = vcombine.high %v865, 0.0
        %v870 = vcombine.low %v842, %v849
        %v872 = vunpack.c.l.s4 1983009808
        %v873 = vunpack.c.0.s8 %v872
        %v874 = vlaneseq
        %v875 = vshrl.u32 %v874, 7
        %v876 = vsub.s32 %v873, %v875
        %v877 = vrot.slane %v870, %v876
        %v878 = vcombine.low %v866, %v867
        %v880 = vunpack.c.l.s4 1983009808
        %v881 = vunpack.c.0.s8 %v880
        %v882 = vlaneseq
        %v883 = vshrl.u32 %v882, 7
        %v884 = vsub.s32 %v881, %v883
        %v885 = vrot.slane %v878, %v884
        %v886 = vcombine.low %v858, %v865
        %v888 = vunpack.c.l.s4 1983009808
        %v889 = vunpack.c.0.s8 %v888
        %v890 = vlaneseq
        %v891 = vshrl.u32 %v890, 7
        %v892 = vsub.s32 %v889, %v891
        %v893 = vrot.slane %v886, %v892
        %v894 = vcombine.low %v868, %v869
        %v896 = vunpack.c.l.s4 1983009808
        %v897 = vunpack.c.0.s8 %v896
        %v898 = vlaneseq
        %v899 = vshrl.u32 %v898, 7
        %v900 = vsub.s32 %v897, %v899
        %v901 = vrot.slane %v894, %v900
        %v902 = vcombine.low %v877, %v885
        %v903 = vcombine.high %v877, %v885
        %v905 = vunpack.c.l.s4 1934713408
        %v906 = vunpack.c.0.s8 %v905
        %v907 = vlaneseq
        %v908 = vshrl.u32 %v907, 7
        %v909 = vsub.s32 %v906, %v908
        %v910 = vrot.slane %v902, %v909
        %v912 = vunpack.c.l.s4 1934713408
        %v913 = vunpack.c.0.s8 %v912
        %v914 = vlaneseq
        %v915 = vshrl.u32 %v914, 7
        %v916 = vsub.s32 %v913, %v915
        %v917 = vrot.slane %v903, %v916
        %v918 = vcombine.low %v893, %v901
        %v919 = vcombine.high %v893, %v901
        %v921 = vunpack.c.l.s4 1934713408
        %v922 = vunpack.c.0.s8 %v921
        %v923 = vlaneseq
        %v924 = vshrl.u32 %v923, 7
        %v925 = vsub.s32 %v922, %v924
        %v926 = vrot.slane %v918, %v925
        %v928 = vunpack.c.l.s4 1934713408
        %v929 = vunpack.c.0.s8 %v928
        %v930 = vlaneseq
        %v931 = vshrl.u32 %v930, 7
        %v932 = vsub.s32 %v929, %v931
        %v933 = vrot.slane %v919, %v932
        %v934 = vcombine.low %v910, %v926
        %v935 = vcombine.high %v910, %v926
        %v936 = vcombine.low %v917, %v933
        %v937 = vcombine.high %v917, %v933
        %v938 = vpack.c.bf16 %v640, %v640
        %v939 = vpack.c.bf16 %v641, %v641
        %v940 = vpack.c.bf16 %v642, %v642
        %v941 = vpack.c.bf16 %v643, %v643
        %v942 = vpack.c.bf16 %v788, %v788
        %v943 = vpack.c.bf16 %v789, %v789
        %v944 = vpack.c.bf16 %v790, %v790
        %v945 = vpack.c.bf16 %v791, %v791
        %v946 = vld [vmem:[%s376] sm:$0x1]
        %v948 = vlaneseq
        %v949 = vshrl.u32 %v948, 7
        %v950 = vsub.s32 0, %v949
        %v951 = vrot.slane %v946, %v950
        %vm953 = vcmask 130048
        %v955 = vsel %vm953, %v938, 0
        %v958 = vsel %vm953, %v942, 0
        %960 = vmatprep.subr.bf16.mxu0 0
        %961 = vmatpush1.bf16.xpose.msra.mxu0 0
        %962 = vmatprep.subr.bf16.mxu0 0
        %963 = vmatpush1.bf16.xpose.msra.mxu0 0
        %964 = vmatprep.subr.bf16.mxu0 0
        %965 = vmatpush1.bf16.xpose.msra.mxu0 0
        %966 = vmatprep.subr.bf16.mxu0 0
        %967 = vmatpush1.bf16.xpose.msra.mxu0 0
        %968 = vmatprep.subr.bf16.mxu0 0
        %969 = vmatpush1.bf16.xpose.msra.mxu0 0
        %970 = vmatprep.subr.bf16.mxu0 0
        %971 = vmatpush1.bf16.xpose.msra.mxu0 0
        %972 = vmatprep.subr.bf16.mxu0 0
        %973 = vmatpush1.bf16.xpose.msra.mxu0 0
        %974 = vmatprep.subr.bf16.mxu0 0
        %975 = vmatpush1.bf16.xpose.msra.mxu0 %v958
        %976 = vmatprep.subr.bf16.mxu0 0
        %977 = vmatpush2.bf16.xpose.msra.mxu0 0
        %978 = vmatprep.subr.bf16.mxu0 0
        %979 = vmatpush2.bf16.xpose.msra.mxu0 0
        %980 = vmatprep.subr.bf16.mxu0 0
        %981 = vmatpush2.bf16.xpose.msra.mxu0 0
        %982 = vmatprep.subr.bf16.mxu0 0
        %983 = vmatpush2.bf16.xpose.msra.mxu0 0
        %984 = vmatprep.subr.bf16.mxu0 0
        %985 = vmatpush2.bf16.xpose.msra.mxu0 0
        %986 = vmatprep.subr.bf16.mxu0 0
        %987 = vmatpush2.bf16.xpose.msra.mxu0 0
        %988 = vmatprep.subr.bf16.mxu0 0
        %989 = vmatpush2.bf16.xpose.msra.mxu0 0
        %990 = vmatprep.subr.bf16.mxu0 0
        %991 = vmatpush2.bf16.xpose.msra.mxu0 0
        %992 = vmatprep.mubr.bf16.mxu0 0
        %993 = vmatmul.mubr.bf16.gmra.mxu0 %v955
        %v994 = vpop.f32.mrf.mxu0
        %v995 = vadd.f32 %v951, %v994
        %v996 = vpop.f32.mrf.mxu0
        %v997 = vpop.f32.mrf.mxu0
        %v998 = vpop.f32.mrf.mxu0
        %999 = vdwg.mxu0
        %v1001 = vsel %vm953, %v939, 0
        %v1004 = vsel %vm953, %v943, 0
        %1006 = vmatprep.subr.bf16.mxu0 0
        %1007 = vmatpush1.bf16.xpose.msra.mxu0 0
        %1008 = vmatprep.subr.bf16.mxu0 0
        %1009 = vmatpush1.bf16.xpose.msra.mxu0 0
        %1010 = vmatprep.subr.bf16.mxu0 0
        %1011 = vmatpush1.bf16.xpose.msra.mxu0 0
        %1012 = vmatprep.subr.bf16.mxu0 0
        %1013 = vmatpush1.bf16.xpose.msra.mxu0 0
        %1014 = vmatprep.subr.bf16.mxu0 0
        %1015 = vmatpush1.bf16.xpose.msra.mxu0 0
        %1016 = vmatprep.subr.bf16.mxu0 0
        %1017 = vmatpush1.bf16.xpose.msra.mxu0 0
        %1018 = vmatprep.subr.bf16.mxu0 0
        %1019 = vmatpush1.bf16.xpose.msra.mxu0 0
        %1020 = vmatprep.subr.bf16.mxu0 0
        %1021 = vmatpush1.bf16.xpose.msra.mxu0 %v1004
        %1022 = vmatprep.subr.bf16.mxu0 0
        %1023 = vmatpush2.bf16.xpose.msra.mxu0 0
        %1024 = vmatprep.subr.bf16.mxu0 0
        %1025 = vmatpush2.bf16.xpose.msra.mxu0 0
        %1026 = vmatprep.subr.bf16.mxu0 0
        %1027 = vmatpush2.bf16.xpose.msra.mxu0 0
        %1028 = vmatprep.subr.bf16.mxu0 0
        %1029 = vmatpush2.bf16.xpose.msra.mxu0 0
        %1030 = vmatprep.subr.bf16.mxu0 0
        %1031 = vmatpush2.bf16.xpose.msra.mxu0 0
        %1032 = vmatprep.subr.bf16.mxu0 0
        %1033 = vmatpush2.bf16.xpose.msra.mxu0 0
        %1034 = vmatprep.subr.bf16.mxu0 0
        %1035 = vmatpush2.bf16.xpose.msra.mxu0 0
        %1036 = vmatprep.subr.bf16.mxu0 0
        %1037 = vmatpush2.bf16.xpose.msra.mxu0 0
        %1038 = vmatprep.mubr.bf16.mxu0 0
        %1039 = vmatmul.mubr.bf16.gmra.mxu0 %v1001
        %v1040 = vpop.f32.mrf.mxu0
        %v1041 = vadd.f32 %v951, %v1040
        %v1042 = vpop.f32.mrf.mxu0
        %v1043 = vpop.f32.mrf.mxu0
        %v1044 = vpop.f32.mrf.mxu0
        %1045 = vdwg.mxu0
        %v1047 = vsel %vm953, %v940, 0
        %v1050 = vsel %vm953, %v944, 0
        %1052 = vmatprep.subr.bf16.mxu0 0
        %1053 = vmatpush1.bf16.xpose.msra.mxu0 0
        %1054 = vmatprep.subr.bf16.mxu0 0
        %1055 = vmatpush1.bf16.xpose.msra.mxu0 0
        %1056 = vmatprep.subr.bf16.mxu0 0
        %1057 = vmatpush1.bf16.xpose.msra.mxu0 0
        %1058 = vmatprep.subr.bf16.mxu0 0
        %1059 = vmatpush1.bf16.xpose.msra.mxu0 0
        %1060 = vmatprep.subr.bf16.mxu0 0
        %1061 = vmatpush1.bf16.xpose.msra.mxu0 0
        %1062 = vmatprep.subr.bf16.mxu0 0
        %1063 = vmatpush1.bf16.xpose.msra.mxu0 0
        %1064 = vmatprep.subr.bf16.mxu0 0
        %1065 = vmatpush1.bf16.xpose.msra.mxu0 0
        %1066 = vmatprep.subr.bf16.mxu0 0
        %1067 = vmatpush1.bf16.xpose.msra.mxu0 %v1050
        %1068 = vmatprep.subr.bf16.mxu0 0
        %1069 = vmatpush2.bf16.xpose.msra.mxu0 0
        %1070 = vmatprep.subr.bf16.mxu0 0
        %1071 = vmatpush2.bf16.xpose.msra.mxu0 0
        %1072 = vmatprep.subr.bf16.mxu0 0
        %1073 = vmatpush2.bf16.xpose.msra.mxu0 0
        %1074 = vmatprep.subr.bf16.mxu0 0
        %1075 = vmatpush2.bf16.xpose.msra.mxu0 0
        %1076 = vmatprep.subr.bf16.mxu0 0
        %1077 = vmatpush2.bf16.xpose.msra.mxu0 0
        %1078 = vmatprep.subr.bf16.mxu0 0
        %1079 = vmatpush2.bf16.xpose.msra.mxu0 0
        %1080 = vmatprep.subr.bf16.mxu0 0
        %1081 = vmatpush2.bf16.xpose.msra.mxu0 0
        %1082 = vmatprep.subr.bf16.mxu0 0
        %1083 = vmatpush2.bf16.xpose.msra.mxu0 0
        %1084 = vmatprep.mubr.bf16.mxu0 0
        %1085 = vmatmul.mubr.bf16.gmra.mxu0 %v1047
        %v1086 = vpop.f32.mrf.mxu0
        %v1087 = vadd.f32 %v951, %v1086
        %v1088 = vpop.f32.mrf.mxu0
        %v1089 = vpop.f32.mrf.mxu0
        %v1090 = vpop.f32.mrf.mxu0
        %1091 = vdwg.mxu0
        %v1093 = vsel %vm953, %v941, 0
        %v1096 = vsel %vm953, %v945, 0
        %1098 = vmatprep.subr.bf16.mxu0 0
        %1099 = vmatpush1.bf16.xpose.msra.mxu0 0
        %1100 = vmatprep.subr.bf16.mxu0 0
        %1101 = vmatpush1.bf16.xpose.msra.mxu0 0
        %1102 = vmatprep.subr.bf16.mxu0 0
        %1103 = vmatpush1.bf16.xpose.msra.mxu0 0
        %1104 = vmatprep.subr.bf16.mxu0 0
        %1105 = vmatpush1.bf16.xpose.msra.mxu0 0
        %1106 = vmatprep.subr.bf16.mxu0 0
        %1107 = vmatpush1.bf16.xpose.msra.mxu0 0
        %1108 = vmatprep.subr.bf16.mxu0 0
        %1109 = vmatpush1.bf16.xpose.msra.mxu0 0
        %1110 = vmatprep.subr.bf16.mxu0 0
        %1111 = vmatpush1.bf16.xpose.msra.mxu0 0
        %1112 = vmatprep.subr.bf16.mxu0 0
        %1113 = vmatpush1.bf16.xpose.msra.mxu0 %v1096
        %1114 = vmatprep.subr.bf16.mxu0 0
        %1115 = vmatpush2.bf16.xpose.msra.mxu0 0
        %1116 = vmatprep.subr.bf16.mxu0 0
        %1117 = vmatpush2.bf16.xpose.msra.mxu0 0
        %1118 = vmatprep.subr.bf16.mxu0 0
        %1119 = vmatpush2.bf16.xpose.msra.mxu0 0
        %1120 = vmatprep.subr.bf16.mxu0 0
        %1121 = vmatpush2.bf16.xpose.msra.mxu0 0
        %1122 = vmatprep.subr.bf16.mxu0 0
        %1123 = vmatpush2.bf16.xpose.msra.mxu0 0
        %1124 = vmatprep.subr.bf16.mxu0 0
        %1125 = vmatpush2.bf16.xpose.msra.mxu0 0
        %1126 = vmatprep.subr.bf16.mxu0 0
        %1127 = vmatpush2.bf16.xpose.msra.mxu0 0
        %1128 = vmatprep.subr.bf16.mxu0 0
        %1129 = vmatpush2.bf16.xpose.msra.mxu0 0
        %1130 = vmatprep.mubr.bf16.mxu0 0
        %1131 = vmatmul.mubr.bf16.gmra.mxu0 %v1093
        %v1132 = vpop.f32.mrf.mxu0
        %v1133 = vadd.f32 %v951, %v1132
        %v1134 = vpop.f32.mrf.mxu0
        %v1135 = vpop.f32.mrf.mxu0
        %v1136 = vpop.f32.mrf.mxu0
        %1137 = vdwg.mxu0
        %vm1138 = vcmask 64512
        %v1139 = vsel %vm1138, %v995, -inf
        %1140 = vmax.xlane.f32.xlu0 %v1139
        %v1141 = vpop.xlane.xlu0 %1140
        %v1142 = vsel %vm1138, %v1041, -inf
        %1143 = vmax.xlane.f32.xlu0 %v1142
        %v1144 = vpop.xlane.xlu0 %1143
        %v1145 = vsel %vm1138, %v1087, -inf
        %1146 = vmax.xlane.f32.xlu0 %v1145
        %v1147 = vpop.xlane.xlu0 %1146
        %v1148 = vsel %vm1138, %v1133, -inf
        %1149 = vmax.xlane.f32.xlu0 %v1148
        %v1150 = vpop.xlane.xlu0 %1149
        %v1151 = vsub.f32 %v995, %v1141
        %v1152 = vsub.f32 %v1041, %v1144
        %v1153 = vsub.f32 %v1087, %v1147
        %v1154 = vsub.f32 %v1133, %v1150
        %v1155 = vmul.f32 %v1151, 1.442695
        %v1156 = vpow.pop %v1155
        %v1157 = vmul.f32 %v1152, 1.442695
        %v1158 = vpow.pop %v1157
        %v1159 = vmul.f32 %v1153, 1.442695
        %v1160 = vpow.pop %v1159
        %v1161 = vmul.f32 %v1154, 1.442695
        %v1162 = vpow.pop %v1161
        %v1163 = vsel %vm1138, %v1156, 0.0
        %1164 = vadd.xlane.f32.xlu0 %v1163
        %v1165 = vpop.xlane.xlu0 %1164
        %v1166 = vsel %vm1138, %v1158, 0.0
        %1167 = vadd.xlane.f32.xlu0 %v1166
        %v1168 = vpop.xlane.xlu0 %1167
        %v1169 = vsel %vm1138, %v1160, 0.0
        %1170 = vadd.xlane.f32.xlu0 %v1169
        %v1171 = vpop.xlane.xlu0 %1170
        %v1172 = vsel %vm1138, %v1162, 0.0
        %1173 = vadd.xlane.f32.xlu0 %v1172
        %v1174 = vpop.xlane.xlu0 %1173
        %v1175 = vrcp.pop %v1165
        %v1176 = vrcp.pop %v1168
        %v1177 = vrcp.pop %v1171
        %v1178 = vrcp.pop %v1174
        %v1179 = vmul.f32 %v1156, %v1175
        %v1180 = vmul.f32 %v1158, %v1176
        %v1181 = vmul.f32 %v1160, %v1177
        %v1182 = vmul.f32 %v1162, %v1178
        %v1183 = vpack.c.bf16 %v1179, %v1179
        %v1184 = vpack.c.bf16 %v1180, %v1180
        %v1185 = vpack.c.bf16 %v1181, %v1181
        %v1186 = vpack.c.bf16 %v1182, %v1182
        %v1187 = vpack.c.bf16 %v934, %v934
        %v1188 = vpack.c.bf16 %v935, %v935
        %v1189 = vpack.c.bf16 %v936, %v936
        %v1190 = vpack.c.bf16 %v937, %v937
        %v1192 = vsel %vm1138, %v1183, 0
        %vm1194 = vcmask 1043456
        %v1196 = vsel %vm1194, %v1187, 0
        %1198 = vmatprep.subr.bf16.mxu0 0
        %1199 = vmatpush1.bf16.msra.mxu0 0
        %1200 = vmatprep.subr.bf16.mxu0 0
        %1201 = vmatpush1.bf16.msra.mxu0 0
        %1202 = vmatprep.subr.bf16.mxu0 0
        %1203 = vmatpush1.bf16.msra.mxu0 0
        %1204 = vmatprep.subr.bf16.mxu0 0
        %1205 = vmatpush1.bf16.msra.mxu0 0
        %1206 = vmatprep.subr.bf16.mxu0 0
        %1207 = vmatpush1.bf16.msra.mxu0 0
        %1208 = vmatprep.subr.bf16.mxu0 0
        %1209 = vmatpush1.bf16.msra.mxu0 0
        %1210 = vmatprep.subr.bf16.mxu0 0
        %1211 = vmatpush1.bf16.msra.mxu0 0
        %1212 = vmatprep.subr.bf16.mxu0 0
        %1213 = vmatpush1.bf16.msra.mxu0 %v1196
        %1214 = vmatprep.subr.bf16.mxu0 0
        %1215 = vmatpush2.bf16.msra.mxu0 0
        %1216 = vmatprep.subr.bf16.mxu0 0
        %1217 = vmatpush2.bf16.msra.mxu0 0
        %1218 = vmatprep.subr.bf16.mxu0 0
        %1219 = vmatpush2.bf16.msra.mxu0 0
        %1220 = vmatprep.subr.bf16.mxu0 0
        %1221 = vmatpush2.bf16.msra.mxu0 0
        %1222 = vmatprep.subr.bf16.mxu0 0
        %1223 = vmatpush2.bf16.msra.mxu0 0
        %1224 = vmatprep.subr.bf16.mxu0 0
        %1225 = vmatpush2.bf16.msra.mxu0 0
        %1226 = vmatprep.subr.bf16.mxu0 0
        %1227 = vmatpush2.bf16.msra.mxu0 0
        %1228 = vmatprep.subr.bf16.mxu0 0
        %1229 = vmatpush2.bf16.msra.mxu0 0
        %1230 = vmatprep.mubr.bf16.mxu0 0
        %1231 = vmatmul.mubr.bf16.gmra.mxu0 %v1192
        %v1232 = vpop.f32.mrf.mxu0
        %v1233 = vadd.f32 0.0, %v1232
        %v1234 = vpop.f32.mrf.mxu0
        %v1235 = vpop.f32.mrf.mxu0
        %v1236 = vpop.f32.mrf.mxu0
        %1237 = vdwg.mxu0
        %v1239 = vsel %vm1138, %v1184, 0
        %v1242 = vsel %vm1194, %v1188, 0
        %1244 = vmatprep.subr.bf16.mxu0 0
        %1245 = vmatpush1.bf16.msra.mxu0 0
        %1246 = vmatprep.subr.bf16.mxu0 0
        %1247 = vmatpush1.bf16.msra.mxu0 0
        %1248 = vmatprep.subr.bf16.mxu0 0
        %1249 = vmatpush1.bf16.msra.mxu0 0
        %1250 = vmatprep.subr.bf16.mxu0 0
        %1251 = vmatpush1.bf16.msra.mxu0 0
        %1252 = vmatprep.subr.bf16.mxu0 0
        %1253 = vmatpush1.bf16.msra.mxu0 0
        %1254 = vmatprep.subr.bf16.mxu0 0
        %1255 = vmatpush1.bf16.msra.mxu0 0
        %1256 = vmatprep.subr.bf16.mxu0 0
        %1257 = vmatpush1.bf16.msra.mxu0 0
        %1258 = vmatprep.subr.bf16.mxu0 0
        %1259 = vmatpush1.bf16.msra.mxu0 %v1242
        %1260 = vmatprep.subr.bf16.mxu0 0
        %1261 = vmatpush2.bf16.msra.mxu0 0
        %1262 = vmatprep.subr.bf16.mxu0 0
        %1263 = vmatpush2.bf16.msra.mxu0 0
        %1264 = vmatprep.subr.bf16.mxu0 0
        %1265 = vmatpush2.bf16.msra.mxu0 0
        %1266 = vmatprep.subr.bf16.mxu0 0
        %1267 = vmatpush2.bf16.msra.mxu0 0
        %1268 = vmatprep.subr.bf16.mxu0 0
        %1269 = vmatpush2.bf16.msra.mxu0 0
        %1270 = vmatprep.subr.bf16.mxu0 0
        %1271 = vmatpush2.bf16.msra.mxu0 0
        %1272 = vmatprep.subr.bf16.mxu0 0
        %1273 = vmatpush2.bf16.msra.mxu0 0
        %1274 = vmatprep.subr.bf16.mxu0 0
        %1275 = vmatpush2.bf16.msra.mxu0 0
        %1276 = vmatprep.mubr.bf16.mxu0 0
        %1277 = vmatmul.mubr.bf16.gmra.mxu0 %v1239
        %v1278 = vpop.f32.mrf.mxu0
        %v1279 = vadd.f32 0.0, %v1278
        %v1280 = vpop.f32.mrf.mxu0
        %v1281 = vpop.f32.mrf.mxu0
        %v1282 = vpop.f32.mrf.mxu0
        %1283 = vdwg.mxu0
        %v1285 = vsel %vm1138, %v1185, 0
        %v1288 = vsel %vm1194, %v1189, 0
        %1290 = vmatprep.subr.bf16.mxu0 0
        %1291 = vmatpush1.bf16.msra.mxu0 0
        %1292 = vmatprep.subr.bf16.mxu0 0
        %1293 = vmatpush1.bf16.msra.mxu0 0
        %1294 = vmatprep.subr.bf16.mxu0 0
        %1295 = vmatpush1.bf16.msra.mxu0 0
        %1296 = vmatprep.subr.bf16.mxu0 0
        %1297 = vmatpush1.bf16.msra.mxu0 0
        %1298 = vmatprep.subr.bf16.mxu0 0
        %1299 = vmatpush1.bf16.msra.mxu0 0
        %1300 = vmatprep.subr.bf16.mxu0 0
        %1301 = vmatpush1.bf16.msra.mxu0 0
        %1302 = vmatprep.subr.bf16.mxu0 0
        %1303 = vmatpush1.bf16.msra.mxu0 0
        %1304 = vmatprep.subr.bf16.mxu0 0
        %1305 = vmatpush1.bf16.msra.mxu0 %v1288
        %1306 = vmatprep.subr.bf16.mxu0 0
        %1307 = vmatpush2.bf16.msra.mxu0 0
        %1308 = vmatprep.subr.bf16.mxu0 0
        %1309 = vmatpush2.bf16.msra.mxu0 0
        %1310 = vmatprep.subr.bf16.mxu0 0
        %1311 = vmatpush2.bf16.msra.mxu0 0
        %1312 = vmatprep.subr.bf16.mxu0 0
        %1313 = vmatpush2.bf16.msra.mxu0 0
        %1314 = vmatprep.subr.bf16.mxu0 0
        %1315 = vmatpush2.bf16.msra.mxu0 0
        %1316 = vmatprep.subr.bf16.mxu0 0
        %1317 = vmatpush2.bf16.msra.mxu0 0
        %1318 = vmatprep.subr.bf16.mxu0 0
        %1319 = vmatpush2.bf16.msra.mxu0 0
        %1320 = vmatprep.subr.bf16.mxu0 0
        %1321 = vmatpush2.bf16.msra.mxu0 0
        %1322 = vmatprep.mubr.bf16.mxu0 0
        %1323 = vmatmul.mubr.bf16.gmra.mxu0 %v1285
        %v1324 = vpop.f32.mrf.mxu0
        %v1325 = vadd.f32 0.0, %v1324
        %v1326 = vpop.f32.mrf.mxu0
        %v1327 = vpop.f32.mrf.mxu0
        %v1328 = vpop.f32.mrf.mxu0
        %1329 = vdwg.mxu0
        %v1331 = vsel %vm1138, %v1186, 0
        %v1334 = vsel %vm1194, %v1190, 0
        %1336 = vmatprep.subr.bf16.mxu0 0
        %1337 = vmatpush1.bf16.msra.mxu0 0
        %1338 = vmatprep.subr.bf16.mxu0 0
        %1339 = vmatpush1.bf16.msra.mxu0 0
        %1340 = vmatprep.subr.bf16.mxu0 0
        %1341 = vmatpush1.bf16.msra.mxu0 0
        %1342 = vmatprep.subr.bf16.mxu0 0
        %1343 = vmatpush1.bf16.msra.mxu0 0
        %1344 = vmatprep.subr.bf16.mxu0 0
        %1345 = vmatpush1.bf16.msra.mxu0 0
        %1346 = vmatprep.subr.bf16.mxu0 0
        %1347 = vmatpush1.bf16.msra.mxu0 0
        %1348 = vmatprep.subr.bf16.mxu0 0
        %1349 = vmatpush1.bf16.msra.mxu0 0
        %1350 = vmatprep.subr.bf16.mxu0 0
        %1351 = vmatpush1.bf16.msra.mxu0 %v1334
        %1352 = vmatprep.subr.bf16.mxu0 0
        %1353 = vmatpush2.bf16.msra.mxu0 0
        %1354 = vmatprep.subr.bf16.mxu0 0
        %1355 = vmatpush2.bf16.msra.mxu0 0
        %1356 = vmatprep.subr.bf16.mxu0 0
        %1357 = vmatpush2.bf16.msra.mxu0 0
        %1358 = vmatprep.subr.bf16.mxu0 0
        %1359 = vmatpush2.bf16.msra.mxu0 0
        %1360 = vmatprep.subr.bf16.mxu0 0
        %1361 = vmatpush2.bf16.msra.mxu0 0
        %1362 = vmatprep.subr.bf16.mxu0 0
        %1363 = vmatpush2.bf16.msra.mxu0 0
        %1364 = vmatprep.subr.bf16.mxu0 0
        %1365 = vmatpush2.bf16.msra.mxu0 0
        %1366 = vmatprep.subr.bf16.mxu0 0
        %1367 = vmatpush2.bf16.msra.mxu0 0
        %1368 = vmatprep.mubr.bf16.mxu0 0
        %1369 = vmatmul.mubr.bf16.gmra.mxu0 %v1331
        %v1370 = vpop.f32.mrf.mxu0
        %v1371 = vadd.f32 0.0, %v1370
        %v1372 = vpop.f32.mrf.mxu0
        %v1373 = vpop.f32.mrf.mxu0
        %v1374 = vpop.f32.mrf.mxu0
        %1375 = vdwg.mxu0
        %v1376 = vcombine.low %v1233, %v1325
        %v1377 = vcombine.high %v1233, %v1325
        %v1379 = vunpack.c.l.s4 1983009808
        %v1380 = vunpack.c.0.s8 %v1379
        %v1381 = vlaneseq
        %v1382 = vshrl.u32 %v1381, 7
        %v1383 = vsub.s32 %v1380, %v1382
        %v1384 = vrot.slane %v1376, %v1383
        %v1386 = vunpack.c.l.s4 1983009808
        %v1387 = vunpack.c.0.s8 %v1386
        %v1388 = vlaneseq
        %v1389 = vshrl.u32 %v1388, 7
        %v1390 = vsub.s32 %v1387, %v1389
        %v1391 = vrot.slane %v1377, %v1390
        %v1392 = vcombine.low %v1279, %v1371
        %v1393 = vcombine.high %v1279, %v1371
        %v1395 = vunpack.c.l.s4 1983009808
        %v1396 = vunpack.c.0.s8 %v1395
        %v1397 = vlaneseq
        %v1398 = vshrl.u32 %v1397, 7
        %v1399 = vsub.s32 %v1396, %v1398
        %v1400 = vrot.slane %v1392, %v1399
        %v1402 = vunpack.c.l.s4 1983009808
        %v1403 = vunpack.c.0.s8 %v1402
        %v1404 = vlaneseq
        %v1405 = vshrl.u32 %v1404, 7
        %v1406 = vsub.s32 %v1403, %v1405
        %v1407 = vrot.slane %v1393, %v1406
        %v1408 = vcombine.low %v1384, %v1400
        %v1409 = vcombine.high %v1384, %v1400
        %v1411 = vunpack.c.l.s4 1934713408
        %v1412 = vunpack.c.0.s8 %v1411
        %v1413 = vlaneseq
        %v1414 = vshrl.u32 %v1413, 7
        %v1415 = vsub.s32 %v1412, %v1414
        %v1416 = vrot.slane %v1408, %v1415
        %v1418 = vunpack.c.l.s4 1934713408
        %v1419 = vunpack.c.0.s8 %v1418
        %v1420 = vlaneseq
        %v1421 = vshrl.u32 %v1420, 7
        %v1422 = vsub.s32 %v1419, %v1421
        %v1423 = vrot.slane %v1409, %v1422
        %v1424 = vcombine.low %v1391, %v1407
        %v1425 = vcombine.high %v1391, %v1407
        %v1427 = vunpack.c.l.s4 1934713408
        %v1428 = vunpack.c.0.s8 %v1427
        %v1429 = vlaneseq
        %v1430 = vshrl.u32 %v1429, 7
        %v1431 = vsub.s32 %v1428, %v1430
        %v1432 = vrot.slane %v1424, %v1431
        %v1434 = vunpack.c.l.s4 1934713408
        %v1435 = vunpack.c.0.s8 %v1434
        %v1436 = vlaneseq
        %v1437 = vshrl.u32 %v1436, 7
        %v1438 = vsub.s32 %v1435, %v1437
        %v1439 = vrot.slane %v1425, %v1438
        %v1440 = vcombine.high %v1416, 0.0
        %v1441 = vcombine.high %v1423, 0.0
        %v1442 = vcombine.high %v1432, 0.0
        %v1443 = vcombine.high %v1439, 0.0
        %v1444 = vcombine.low %v1416, %v1423
        %v1446 = vunpack.c.l.s4 1983009808
        %v1447 = vunpack.c.0.s8 %v1446
        %v1448 = vlaneseq
        %v1449 = vshrl.u32 %v1448, 7
        %v1450 = vsub.s32 %v1447, %v1449
        %v1451 = vrot.slane %v1444, %v1450
        %v1452 = vcombine.low %v1440, %v1441
        %v1454 = vunpack.c.l.s4 1983009808
        %v1455 = vunpack.c.0.s8 %v1454
        %v1456 = vlaneseq
        %v1457 = vshrl.u32 %v1456, 7
        %v1458 = vsub.s32 %v1455, %v1457
        %v1459 = vrot.slane %v1452, %v1458
        %v1460 = vcombine.low %v1432, %v1439
        %v1462 = vunpack.c.l.s4 1983009808
        %v1463 = vunpack.c.0.s8 %v1462
        %v1464 = vlaneseq
        %v1465 = vshrl.u32 %v1464, 7
        %v1466 = vsub.s32 %v1463, %v1465
        %v1467 = vrot.slane %v1460, %v1466
        %v1468 = vcombine.low %v1442, %v1443
        %v1470 = vunpack.c.l.s4 1983009808
        %v1471 = vunpack.c.0.s8 %v1470
        %v1472 = vlaneseq
        %v1473 = vshrl.u32 %v1472, 7
        %v1474 = vsub.s32 %v1471, %v1473
        %v1475 = vrot.slane %v1468, %v1474
        %v1476 = vcombine.low %v1451, %v1459
        %v1477 = vcombine.high %v1451, %v1459
        %v1479 = vunpack.c.l.s4 1934713408
        %v1480 = vunpack.c.0.s8 %v1479
        %v1481 = vlaneseq
        %v1482 = vshrl.u32 %v1481, 7
        %v1483 = vsub.s32 %v1480, %v1482
        %v1484 = vrot.slane %v1476, %v1483
        %v1486 = vunpack.c.l.s4 1934713408
        %v1487 = vunpack.c.0.s8 %v1486
        %v1488 = vlaneseq
        %v1489 = vshrl.u32 %v1488, 7
        %v1490 = vsub.s32 %v1487, %v1489
        %v1491 = vrot.slane %v1477, %v1490
        %v1492 = vcombine.low %v1467, %v1475
        %v1493 = vcombine.high %v1467, %v1475
        %v1495 = vunpack.c.l.s4 1934713408
        %v1496 = vunpack.c.0.s8 %v1495
        %v1497 = vlaneseq
        %v1498 = vshrl.u32 %v1497, 7
        %v1499 = vsub.s32 %v1496, %v1498
        %v1500 = vrot.slane %v1492, %v1499
        %v1502 = vunpack.c.l.s4 1934713408
        %v1503 = vunpack.c.0.s8 %v1502
        %v1504 = vlaneseq
        %v1505 = vshrl.u32 %v1504, 7
        %v1506 = vsub.s32 %v1503, %v1505
        %v1507 = vrot.slane %v1493, %v1506
        %v1508 = vcombine.low %v1484, %v1500
        %v1509 = vcombine.high %v1484, %v1500
        %v1510 = vcombine.low %v1491, %v1507
        %v1511 = vcombine.high %v1491, %v1507
        %1513 = vrot.lane.b32.xlu0 %v1509, 16
        %v1514 = vpop.permute.xlu0 %1513
        %1517 = vrot.lane.b32.xlu0 %v1510, 32
        %v1518 = vpop.permute.xlu0 %1517
        %1521 = vrot.lane.b32.xlu0 %v1511, 48
        %v1522 = vpop.permute.xlu0 %1521
        %v1524 = vsel %vm953, %v1508, %v1514
        %v1525 = vsel %vm451, %v1524, %v1518
        %vm1526 = vcmask 392192
        %v1527 = vsel %vm1526, %v1525, %v1522
        %1529 = vrot.lane.b32.xlu0 %v494, 112
        %v1530 = vpop.permute.xlu0 %1529
        %1532 = vrot.lane.b32.xlu0 %v494, 96
        %v1533 = vpop.permute.xlu0 %1532
        %1535 = vrot.lane.b32.xlu0 %v494, 80
        %v1536 = vpop.permute.xlu0 %1535
        %v1538 = vcombine.low %v494, %v1533
        %v1539 = vcombine.high %v494, %v1533
        %v1541 = vunpack.c.l.s4 1983009808
        %v1542 = vunpack.c.0.s8 %v1541
        %v1543 = vlaneseq
        %v1544 = vshrl.u32 %v1543, 7
        %v1545 = vsub.s32 %v1542, %v1544
        %v1546 = vrot.slane %v1538, %v1545
        %v1548 = vunpack.c.l.s4 1983009808
        %v1549 = vunpack.c.0.s8 %v1548
        %v1550 = vlaneseq
        %v1551 = vshrl.u32 %v1550, 7
        %v1552 = vsub.s32 %v1549, %v1551
        %v1553 = vrot.slane %v1539, %v1552
        %v1554 = vcombine.low %v1530, %v1536
        %v1555 = vcombine.high %v1530, %v1536
        %v1557 = vunpack.c.l.s4 1983009808
        %v1558 = vunpack.c.0.s8 %v1557
        %v1559 = vlaneseq
        %v1560 = vshrl.u32 %v1559, 7
        %v1561 = vsub.s32 %v1558, %v1560
        %v1562 = vrot.slane %v1554, %v1561
        %v1564 = vunpack.c.l.s4 1983009808
        %v1565 = vunpack.c.0.s8 %v1564
        %v1566 = vlaneseq
        %v1567 = vshrl.u32 %v1566, 7
        %v1568 = vsub.s32 %v1565, %v1567
        %v1569 = vrot.slane %v1555, %v1568
        %v1570 = vcombine.low %v1546, %v1562
        %v1571 = vcombine.high %v1546, %v1562
        %v1573 = vunpack.c.l.s4 1934713408
        %v1574 = vunpack.c.0.s8 %v1573
        %v1575 = vlaneseq
        %v1576 = vshrl.u32 %v1575, 7
        %v1577 = vsub.s32 %v1574, %v1576
        %v1578 = vrot.slane %v1570, %v1577
        %v1580 = vunpack.c.l.s4 1934713408
        %v1581 = vunpack.c.0.s8 %v1580
        %v1582 = vlaneseq
        %v1583 = vshrl.u32 %v1582, 7
        %v1584 = vsub.s32 %v1581, %v1583
        %v1585 = vrot.slane %v1571, %v1584
        %v1586 = vcombine.low %v1553, %v1569
        %v1587 = vcombine.high %v1553, %v1569
        %v1589 = vunpack.c.l.s4 1934713408
        %v1590 = vunpack.c.0.s8 %v1589
        %v1591 = vlaneseq
        %v1592 = vshrl.u32 %v1591, 7
        %v1593 = vsub.s32 %v1590, %v1592
        %v1594 = vrot.slane %v1586, %v1593
        %v1596 = vunpack.c.l.s4 1934713408
        %v1597 = vunpack.c.0.s8 %v1596
        %v1598 = vlaneseq
        %v1599 = vshrl.u32 %v1598, 7
        %v1600 = vsub.s32 %v1597, %v1599
        %v1601 = vrot.slane %v1587, %v1600
        %v1602 = vcombine.high %v1578, 0.0
        %v1603 = vcombine.high %v1585, 0.0
        %v1604 = vcombine.high %v1594, 0.0
        %v1605 = vcombine.high %v1601, 0.0
        %v1606 = vcombine.low %v1578, %v1585
        %v1608 = vunpack.c.l.s4 1983009808
        %v1609 = vunpack.c.0.s8 %v1608
        %v1610 = vlaneseq
        %v1611 = vshrl.u32 %v1610, 7
        %v1612 = vsub.s32 %v1609, %v1611
        %v1613 = vrot.slane %v1606, %v1612
        %v1614 = vcombine.low %v1602, %v1603
        %v1616 = vunpack.c.l.s4 1983009808
        %v1617 = vunpack.c.0.s8 %v1616
        %v1618 = vlaneseq
        %v1619 = vshrl.u32 %v1618, 7
        %v1620 = vsub.s32 %v1617, %v1619
        %v1621 = vrot.slane %v1614, %v1620
        %v1622 = vcombine.low %v1594, %v1601
        %v1624 = vunpack.c.l.s4 1983009808
        %v1625 = vunpack.c.0.s8 %v1624
        %v1626 = vlaneseq
        %v1627 = vshrl.u32 %v1626, 7
        %v1628 = vsub.s32 %v1625, %v1627
        %v1629 = vrot.slane %v1622, %v1628
        %v1630 = vcombine.low %v1604, %v1605
        %v1632 = vunpack.c.l.s4 1983009808
        %v1633 = vunpack.c.0.s8 %v1632
        %v1634 = vlaneseq
        %v1635 = vshrl.u32 %v1634, 7
        %v1636 = vsub.s32 %v1633, %v1635
        %v1637 = vrot.slane %v1630, %v1636
        %v1638 = vcombine.low %v1613, %v1621
        %v1639 = vcombine.high %v1613, %v1621
        %v1641 = vunpack.c.l.s4 1934713408
        %v1642 = vunpack.c.0.s8 %v1641
        %v1643 = vlaneseq
        %v1644 = vshrl.u32 %v1643, 7
        %v1645 = vsub.s32 %v1642, %v1644
        %v1646 = vrot.slane %v1638, %v1645
        %v1648 = vunpack.c.l.s4 1934713408
        %v1649 = vunpack.c.0.s8 %v1648
        %v1650 = vlaneseq
        %v1651 = vshrl.u32 %v1650, 7
        %v1652 = vsub.s32 %v1649, %v1651
        %v1653 = vrot.slane %v1639, %v1652
        %v1654 = vcombine.low %v1629, %v1637
        %v1655 = vcombine.high %v1629, %v1637
        %v1657 = vunpack.c.l.s4 1934713408
        %v1658 = vunpack.c.0.s8 %v1657
        %v1659 = vlaneseq
        %v1660 = vshrl.u32 %v1659, 7
        %v1661 = vsub.s32 %v1658, %v1660
        %v1662 = vrot.slane %v1654, %v1661
        %v1664 = vunpack.c.l.s4 1934713408
        %v1665 = vunpack.c.0.s8 %v1664
        %v1666 = vlaneseq
        %v1667 = vshrl.u32 %v1666, 7
        %v1668 = vsub.s32 %v1665, %v1667
        %v1669 = vrot.slane %v1655, %v1668
        %v1670 = vcombine.low %v1646, %v1662
        %v1671 = vcombine.high %v1646, %v1662
        %v1672 = vcombine.low %v1653, %v1669
        %v1673 = vcombine.high %v1653, %v1669
        %1674 = vrot.lane.b32.xlu0 %v494, 64
        %v1675 = vpop.permute.xlu0 %1674
        %1676 = vrot.lane.b32.xlu0 %v1530, 64
        %v1677 = vpop.permute.xlu0 %1676
        %1678 = vrot.lane.b32.xlu0 %v1533, 64
        %v1679 = vpop.permute.xlu0 %1678
        %1680 = vrot.lane.b32.xlu0 %v1536, 64
        %v1681 = vpop.permute.xlu0 %1680
        %v1686 = vcombine.low %v1675, %v1679
        %v1687 = vcombine.high %v1675, %v1679
        %v1689 = vunpack.c.l.s4 1983009808
        %v1690 = vunpack.c.0.s8 %v1689
        %v1691 = vlaneseq
        %v1692 = vshrl.u32 %v1691, 7
        %v1693 = vsub.s32 %v1690, %v1692
        %v1694 = vrot.slane %v1686, %v1693
        %v1696 = vunpack.c.l.s4 1983009808
        %v1697 = vunpack.c.0.s8 %v1696
        %v1698 = vlaneseq
        %v1699 = vshrl.u32 %v1698, 7
        %v1700 = vsub.s32 %v1697, %v1699
        %v1701 = vrot.slane %v1687, %v1700
        %v1702 = vcombine.low %v1677, %v1681
        %v1703 = vcombine.high %v1677, %v1681
        %v1705 = vunpack.c.l.s4 1983009808
        %v1706 = vunpack.c.0.s8 %v1705
        %v1707 = vlaneseq
        %v1708 = vshrl.u32 %v1707, 7
        %v1709 = vsub.s32 %v1706, %v1708
        %v1710 = vrot.slane %v1702, %v1709
        %v1712 = vunpack.c.l.s4 1983009808
        %v1713 = vunpack.c.0.s8 %v1712
        %v1714 = vlaneseq
        %v1715 = vshrl.u32 %v1714, 7
        %v1716 = vsub.s32 %v1713, %v1715
        %v1717 = vrot.slane %v1703, %v1716
        %v1718 = vcombine.low %v1694, %v1710
        %v1719 = vcombine.high %v1694, %v1710
        %v1721 = vunpack.c.l.s4 1934713408
        %v1722 = vunpack.c.0.s8 %v1721
        %v1723 = vlaneseq
        %v1724 = vshrl.u32 %v1723, 7
        %v1725 = vsub.s32 %v1722, %v1724
        %v1726 = vrot.slane %v1718, %v1725
        %v1728 = vunpack.c.l.s4 1934713408
        %v1729 = vunpack.c.0.s8 %v1728
        %v1730 = vlaneseq
        %v1731 = vshrl.u32 %v1730, 7
        %v1732 = vsub.s32 %v1729, %v1731
        %v1733 = vrot.slane %v1719, %v1732
        %v1734 = vcombine.low %v1701, %v1717
        %v1735 = vcombine.high %v1701, %v1717
        %v1737 = vunpack.c.l.s4 1934713408
        %v1738 = vunpack.c.0.s8 %v1737
        %v1739 = vlaneseq
        %v1740 = vshrl.u32 %v1739, 7
        %v1741 = vsub.s32 %v1738, %v1740
        %v1742 = vrot.slane %v1734, %v1741
        %v1744 = vunpack.c.l.s4 1934713408
        %v1745 = vunpack.c.0.s8 %v1744
        %v1746 = vlaneseq
        %v1747 = vshrl.u32 %v1746, 7
        %v1748 = vsub.s32 %v1745, %v1747
        %v1749 = vrot.slane %v1735, %v1748
        %v1750 = vcombine.high %v1726, 0.0
        %v1751 = vcombine.high %v1733, 0.0
        %v1752 = vcombine.high %v1742, 0.0
        %v1753 = vcombine.high %v1749, 0.0
        %v1754 = vcombine.low %v1726, %v1733
        %v1756 = vunpack.c.l.s4 1983009808
        %v1757 = vunpack.c.0.s8 %v1756
        %v1758 = vlaneseq
        %v1759 = vshrl.u32 %v1758, 7
        %v1760 = vsub.s32 %v1757, %v1759
        %v1761 = vrot.slane %v1754, %v1760
        %v1762 = vcombine.low %v1750, %v1751
        %v1764 = vunpack.c.l.s4 1983009808
        %v1765 = vunpack.c.0.s8 %v1764
        %v1766 = vlaneseq
        %v1767 = vshrl.u32 %v1766, 7
        %v1768 = vsub.s32 %v1765, %v1767
        %v1769 = vrot.slane %v1762, %v1768
        %v1770 = vcombine.low %v1742, %v1749
        %v1772 = vunpack.c.l.s4 1983009808
        %v1773 = vunpack.c.0.s8 %v1772
        %v1774 = vlaneseq
        %v1775 = vshrl.u32 %v1774, 7
        %v1776 = vsub.s32 %v1773, %v1775
        %v1777 = vrot.slane %v1770, %v1776
        %v1778 = vcombine.low %v1752, %v1753
        %v1780 = vunpack.c.l.s4 1983009808
        %v1781 = vunpack.c.0.s8 %v1780
        %v1782 = vlaneseq
        %v1783 = vshrl.u32 %v1782, 7
        %v1784 = vsub.s32 %v1781, %v1783
        %v1785 = vrot.slane %v1778, %v1784
        %v1786 = vcombine.low %v1761, %v1769
        %v1787 = vcombine.high %v1761, %v1769
        %v1789 = vunpack.c.l.s4 1934713408
        %v1790 = vunpack.c.0.s8 %v1789
        %v1791 = vlaneseq
        %v1792 = vshrl.u32 %v1791, 7
        %v1793 = vsub.s32 %v1790, %v1792
        %v1794 = vrot.slane %v1786, %v1793
        %v1796 = vunpack.c.l.s4 1934713408
        %v1797 = vunpack.c.0.s8 %v1796
        %v1798 = vlaneseq
        %v1799 = vshrl.u32 %v1798, 7
        %v1800 = vsub.s32 %v1797, %v1799
        %v1801 = vrot.slane %v1787, %v1800
        %v1802 = vcombine.low %v1777, %v1785
        %v1803 = vcombine.high %v1777, %v1785
        %v1805 = vunpack.c.l.s4 1934713408
        %v1806 = vunpack.c.0.s8 %v1805
        %v1807 = vlaneseq
        %v1808 = vshrl.u32 %v1807, 7
        %v1809 = vsub.s32 %v1806, %v1808
        %v1810 = vrot.slane %v1802, %v1809
        %v1812 = vunpack.c.l.s4 1934713408
        %v1813 = vunpack.c.0.s8 %v1812
        %v1814 = vlaneseq
        %v1815 = vshrl.u32 %v1814, 7
        %v1816 = vsub.s32 %v1813, %v1815
        %v1817 = vrot.slane %v1803, %v1816
        %v1818 = vcombine.low %v1794, %v1810
        %v1819 = vcombine.high %v1794, %v1810
        %v1820 = vcombine.low %v1801, %v1817
        %v1821 = vcombine.high %v1801, %v1817
        %1823 = vrot.lane.b32.xlu0 %v496, 112
        %v1824 = vpop.permute.xlu0 %1823
        %1826 = vrot.lane.b32.xlu0 %v496, 96
        %v1827 = vpop.permute.xlu0 %1826
        %1829 = vrot.lane.b32.xlu0 %v496, 80
        %v1830 = vpop.permute.xlu0 %1829
        %v1832 = vcombine.low %v496, %v1827
        %v1833 = vcombine.high %v496, %v1827
        %v1835 = vunpack.c.l.s4 1983009808
        %v1836 = vunpack.c.0.s8 %v1835
        %v1837 = vlaneseq
        %v1838 = vshrl.u32 %v1837, 7
        %v1839 = vsub.s32 %v1836, %v1838
        %v1840 = vrot.slane %v1832, %v1839
        %v1842 = vunpack.c.l.s4 1983009808
        %v1843 = vunpack.c.0.s8 %v1842
        %v1844 = vlaneseq
        %v1845 = vshrl.u32 %v1844, 7
        %v1846 = vsub.s32 %v1843, %v1845
        %v1847 = vrot.slane %v1833, %v1846
        %v1848 = vcombine.low %v1824, %v1830
        %v1849 = vcombine.high %v1824, %v1830
        %v1851 = vunpack.c.l.s4 1983009808
        %v1852 = vunpack.c.0.s8 %v1851
        %v1853 = vlaneseq
        %v1854 = vshrl.u32 %v1853, 7
        %v1855 = vsub.s32 %v1852, %v1854
        %v1856 = vrot.slane %v1848, %v1855
        %v1858 = vunpack.c.l.s4 1983009808
        %v1859 = vunpack.c.0.s8 %v1858
        %v1860 = vlaneseq
        %v1861 = vshrl.u32 %v1860, 7
        %v1862 = vsub.s32 %v1859, %v1861
        %v1863 = vrot.slane %v1849, %v1862
        %v1864 = vcombine.low %v1840, %v1856
        %v1865 = vcombine.high %v1840, %v1856
        %v1867 = vunpack.c.l.s4 1934713408
        %v1868 = vunpack.c.0.s8 %v1867
        %v1869 = vlaneseq
        %v1870 = vshrl.u32 %v1869, 7
        %v1871 = vsub.s32 %v1868, %v1870
        %v1872 = vrot.slane %v1864, %v1871
        %v1874 = vunpack.c.l.s4 1934713408
        %v1875 = vunpack.c.0.s8 %v1874
        %v1876 = vlaneseq
        %v1877 = vshrl.u32 %v1876, 7
        %v1878 = vsub.s32 %v1875, %v1877
        %v1879 = vrot.slane %v1865, %v1878
        %v1880 = vcombine.low %v1847, %v1863
        %v1881 = vcombine.high %v1847, %v1863
        %v1883 = vunpack.c.l.s4 1934713408
        %v1884 = vunpack.c.0.s8 %v1883
        %v1885 = vlaneseq
        %v1886 = vshrl.u32 %v1885, 7
        %v1887 = vsub.s32 %v1884, %v1886
        %v1888 = vrot.slane %v1880, %v1887
        %v1890 = vunpack.c.l.s4 1934713408
        %v1891 = vunpack.c.0.s8 %v1890
        %v1892 = vlaneseq
        %v1893 = vshrl.u32 %v1892, 7
        %v1894 = vsub.s32 %v1891, %v1893
        %v1895 = vrot.slane %v1881, %v1894
        %v1896 = vcombine.high %v1872, 0.0
        %v1897 = vcombine.high %v1879, 0.0
        %v1898 = vcombine.high %v1888, 0.0
        %v1899 = vcombine.high %v1895, 0.0
        %v1900 = vcombine.low %v1872, %v1879
        %v1902 = vunpack.c.l.s4 1983009808
        %v1903 = vunpack.c.0.s8 %v1902
        %v1904 = vlaneseq
        %v1905 = vshrl.u32 %v1904, 7
        %v1906 = vsub.s32 %v1903, %v1905
        %v1907 = vrot.slane %v1900, %v1906
        %v1908 = vcombine.low %v1896, %v1897
        %v1910 = vunpack.c.l.s4 1983009808
        %v1911 = vunpack.c.0.s8 %v1910
        %v1912 = vlaneseq
        %v1913 = vshrl.u32 %v1912, 7
        %v1914 = vsub.s32 %v1911, %v1913
        %v1915 = vrot.slane %v1908, %v1914
        %v1916 = vcombine.low %v1888, %v1895
        %v1918 = vunpack.c.l.s4 1983009808
        %v1919 = vunpack.c.0.s8 %v1918
        %v1920 = vlaneseq
        %v1921 = vshrl.u32 %v1920, 7
        %v1922 = vsub.s32 %v1919, %v1921
        %v1923 = vrot.slane %v1916, %v1922
        %v1924 = vcombine.low %v1898, %v1899
        %v1926 = vunpack.c.l.s4 1983009808
        %v1927 = vunpack.c.0.s8 %v1926
        %v1928 = vlaneseq
        %v1929 = vshrl.u32 %v1928, 7
        %v1930 = vsub.s32 %v1927, %v1929
        %v1931 = vrot.slane %v1924, %v1930
        %v1932 = vcombine.low %v1907, %v1915
        %v1933 = vcombine.high %v1907, %v1915
        %v1935 = vunpack.c.l.s4 1934713408
        %v1936 = vunpack.c.0.s8 %v1935
        %v1937 = vlaneseq
        %v1938 = vshrl.u32 %v1937, 7
        %v1939 = vsub.s32 %v1936, %v1938
        %v1940 = vrot.slane %v1932, %v1939
        %v1942 = vunpack.c.l.s4 1934713408
        %v1943 = vunpack.c.0.s8 %v1942
        %v1944 = vlaneseq
        %v1945 = vshrl.u32 %v1944, 7
        %v1946 = vsub.s32 %v1943, %v1945
        %v1947 = vrot.slane %v1933, %v1946
        %v1948 = vcombine.low %v1923, %v1931
        %v1949 = vcombine.high %v1923, %v1931
        %v1951 = vunpack.c.l.s4 1934713408
        %v1952 = vunpack.c.0.s8 %v1951
        %v1953 = vlaneseq
        %v1954 = vshrl.u32 %v1953, 7
        %v1955 = vsub.s32 %v1952, %v1954
        %v1956 = vrot.slane %v1948, %v1955
        %v1958 = vunpack.c.l.s4 1934713408
        %v1959 = vunpack.c.0.s8 %v1958
        %v1960 = vlaneseq
        %v1961 = vshrl.u32 %v1960, 7
        %v1962 = vsub.s32 %v1959, %v1961
        %v1963 = vrot.slane %v1949, %v1962
        %v1964 = vcombine.low %v1940, %v1956
        %v1965 = vcombine.high %v1940, %v1956
        %v1966 = vcombine.low %v1947, %v1963
        %v1967 = vcombine.high %v1947, %v1963
        %v1968 = vpack.c.bf16 %v1670, %v1670
        %v1969 = vpack.c.bf16 %v1671, %v1671
        %v1970 = vpack.c.bf16 %v1672, %v1672
        %v1971 = vpack.c.bf16 %v1673, %v1673
        %v1972 = vpack.c.bf16 %v1818, %v1818
        %v1973 = vpack.c.bf16 %v1819, %v1819
        %v1974 = vpack.c.bf16 %v1820, %v1820
        %v1975 = vpack.c.bf16 %v1821, %v1821
        %s1976 = scalar_lea.vmem %s376, 1
        %v1977 = vld [vmem:[%s1976] sm:$0x1]
        %v1979 = vlaneseq
        %v1980 = vshrl.u32 %v1979, 7
        %v1981 = vsub.s32 0, %v1980
        %v1982 = vrot.slane %v1977, %v1981
        %v1985 = vsel %vm953, %v1968, 0
        %v1988 = vsel %vm953, %v1972, 0
        %1990 = vmatprep.subr.bf16.mxu0 0
        %1991 = vmatpush1.bf16.xpose.msra.mxu0 0
        %1992 = vmatprep.subr.bf16.mxu0 0
        %1993 = vmatpush1.bf16.xpose.msra.mxu0 0
        %1994 = vmatprep.subr.bf16.mxu0 0
        %1995 = vmatpush1.bf16.xpose.msra.mxu0 0
        %1996 = vmatprep.subr.bf16.mxu0 0
        %1997 = vmatpush1.bf16.xpose.msra.mxu0 0
        %1998 = vmatprep.subr.bf16.mxu0 0
        %1999 = vmatpush1.bf16.xpose.msra.mxu0 0
        %2000 = vmatprep.subr.bf16.mxu0 0
        %2001 = vmatpush1.bf16.xpose.msra.mxu0 0
        %2002 = vmatprep.subr.bf16.mxu0 0
        %2003 = vmatpush1.bf16.xpose.msra.mxu0 0
        %2004 = vmatprep.subr.bf16.mxu0 0
        %2005 = vmatpush1.bf16.xpose.msra.mxu0 %v1988
        %2006 = vmatprep.subr.bf16.mxu0 0
        %2007 = vmatpush2.bf16.xpose.msra.mxu0 0
        %2008 = vmatprep.subr.bf16.mxu0 0
        %2009 = vmatpush2.bf16.xpose.msra.mxu0 0
        %2010 = vmatprep.subr.bf16.mxu0 0
        %2011 = vmatpush2.bf16.xpose.msra.mxu0 0
        %2012 = vmatprep.subr.bf16.mxu0 0
        %2013 = vmatpush2.bf16.xpose.msra.mxu0 0
        %2014 = vmatprep.subr.bf16.mxu0 0
        %2015 = vmatpush2.bf16.xpose.msra.mxu0 0
        %2016 = vmatprep.subr.bf16.mxu0 0
        %2017 = vmatpush2.bf16.xpose.msra.mxu0 0
        %2018 = vmatprep.subr.bf16.mxu0 0
        %2019 = vmatpush2.bf16.xpose.msra.mxu0 0
        %2020 = vmatprep.subr.bf16.mxu0 0
        %2021 = vmatpush2.bf16.xpose.msra.mxu0 0
        %2022 = vmatprep.mubr.bf16.mxu0 0
        %2023 = vmatmul.mubr.bf16.gmra.mxu0 %v1985
        %v2024 = vpop.f32.mrf.mxu0
        %v2025 = vadd.f32 %v1982, %v2024
        %v2026 = vpop.f32.mrf.mxu0
        %v2027 = vpop.f32.mrf.mxu0
        %v2028 = vpop.f32.mrf.mxu0
        %2029 = vdwg.mxu0
        %v2031 = vsel %vm953, %v1969, 0
        %v2034 = vsel %vm953, %v1973, 0
        %2036 = vmatprep.subr.bf16.mxu0 0
        %2037 = vmatpush1.bf16.xpose.msra.mxu0 0
        %2038 = vmatprep.subr.bf16.mxu0 0
        %2039 = vmatpush1.bf16.xpose.msra.mxu0 0
        %2040 = vmatprep.subr.bf16.mxu0 0
        %2041 = vmatpush1.bf16.xpose.msra.mxu0 0
        %2042 = vmatprep.subr.bf16.mxu0 0
        %2043 = vmatpush1.bf16.xpose.msra.mxu0 0
        %2044 = vmatprep.subr.bf16.mxu0 0
        %2045 = vmatpush1.bf16.xpose.msra.mxu0 0
        %2046 = vmatprep.subr.bf16.mxu0 0
        %2047 = vmatpush1.bf16.xpose.msra.mxu0 0
        %2048 = vmatprep.subr.bf16.mxu0 0
        %2049 = vmatpush1.bf16.xpose.msra.mxu0 0
        %2050 = vmatprep.subr.bf16.mxu0 0
        %2051 = vmatpush1.bf16.xpose.msra.mxu0 %v2034
        %2052 = vmatprep.subr.bf16.mxu0 0
        %2053 = vmatpush2.bf16.xpose.msra.mxu0 0
        %2054 = vmatprep.subr.bf16.mxu0 0
        %2055 = vmatpush2.bf16.xpose.msra.mxu0 0
        %2056 = vmatprep.subr.bf16.mxu0 0
        %2057 = vmatpush2.bf16.xpose.msra.mxu0 0
        %2058 = vmatprep.subr.bf16.mxu0 0
        %2059 = vmatpush2.bf16.xpose.msra.mxu0 0
        %2060 = vmatprep.subr.bf16.mxu0 0
        %2061 = vmatpush2.bf16.xpose.msra.mxu0 0
        %2062 = vmatprep.subr.bf16.mxu0 0
        %2063 = vmatpush2.bf16.xpose.msra.mxu0 0
        %2064 = vmatprep.subr.bf16.mxu0 0
        %2065 = vmatpush2.bf16.xpose.msra.mxu0 0
        %2066 = vmatprep.subr.bf16.mxu0 0
        %2067 = vmatpush2.bf16.xpose.msra.mxu0 0
        %2068 = vmatprep.mubr.bf16.mxu0 0
        %2069 = vmatmul.mubr.bf16.gmra.mxu0 %v2031
        %v2070 = vpop.f32.mrf.mxu0
        %v2071 = vadd.f32 %v1982, %v2070
        %v2072 = vpop.f32.mrf.mxu0
        %v2073 = vpop.f32.mrf.mxu0
        %v2074 = vpop.f32.mrf.mxu0
        %2075 = vdwg.mxu0
        %v2077 = vsel %vm953, %v1970, 0
        %v2080 = vsel %vm953, %v1974, 0
        %2082 = vmatprep.subr.bf16.mxu0 0
        %2083 = vmatpush1.bf16.xpose.msra.mxu0 0
        %2084 = vmatprep.subr.bf16.mxu0 0
        %2085 = vmatpush1.bf16.xpose.msra.mxu0 0
        %2086 = vmatprep.subr.bf16.mxu0 0
        %2087 = vmatpush1.bf16.xpose.msra.mxu0 0
        %2088 = vmatprep.subr.bf16.mxu0 0
        %2089 = vmatpush1.bf16.xpose.msra.mxu0 0
        %2090 = vmatprep.subr.bf16.mxu0 0
        %2091 = vmatpush1.bf16.xpose.msra.mxu0 0
        %2092 = vmatprep.subr.bf16.mxu0 0
        %2093 = vmatpush1.bf16.xpose.msra.mxu0 0
        %2094 = vmatprep.subr.bf16.mxu0 0
        %2095 = vmatpush1.bf16.xpose.msra.mxu0 0
        %2096 = vmatprep.subr.bf16.mxu0 0
        %2097 = vmatpush1.bf16.xpose.msra.mxu0 %v2080
        %2098 = vmatprep.subr.bf16.mxu0 0
        %2099 = vmatpush2.bf16.xpose.msra.mxu0 0
        %2100 = vmatprep.subr.bf16.mxu0 0
        %2101 = vmatpush2.bf16.xpose.msra.mxu0 0
        %2102 = vmatprep.subr.bf16.mxu0 0
        %2103 = vmatpush2.bf16.xpose.msra.mxu0 0
        %2104 = vmatprep.subr.bf16.mxu0 0
        %2105 = vmatpush2.bf16.xpose.msra.mxu0 0
        %2106 = vmatprep.subr.bf16.mxu0 0
        %2107 = vmatpush2.bf16.xpose.msra.mxu0 0
        %2108 = vmatprep.subr.bf16.mxu0 0
        %2109 = vmatpush2.bf16.xpose.msra.mxu0 0
        %2110 = vmatprep.subr.bf16.mxu0 0
        %2111 = vmatpush2.bf16.xpose.msra.mxu0 0
        %2112 = vmatprep.subr.bf16.mxu0 0
        %2113 = vmatpush2.bf16.xpose.msra.mxu0 0
        %2114 = vmatprep.mubr.bf16.mxu0 0
        %2115 = vmatmul.mubr.bf16.gmra.mxu0 %v2077
        %v2116 = vpop.f32.mrf.mxu0
        %v2117 = vadd.f32 %v1982, %v2116
        %v2118 = vpop.f32.mrf.mxu0
        %v2119 = vpop.f32.mrf.mxu0
        %v2120 = vpop.f32.mrf.mxu0
        %2121 = vdwg.mxu0
        %v2123 = vsel %vm953, %v1971, 0
        %v2126 = vsel %vm953, %v1975, 0
        %2128 = vmatprep.subr.bf16.mxu0 0
        %2129 = vmatpush1.bf16.xpose.msra.mxu0 0
        %2130 = vmatprep.subr.bf16.mxu0 0
        %2131 = vmatpush1.bf16.xpose.msra.mxu0 0
        %2132 = vmatprep.subr.bf16.mxu0 0
        %2133 = vmatpush1.bf16.xpose.msra.mxu0 0
        %2134 = vmatprep.subr.bf16.mxu0 0
        %2135 = vmatpush1.bf16.xpose.msra.mxu0 0
        %2136 = vmatprep.subr.bf16.mxu0 0
        %2137 = vmatpush1.bf16.xpose.msra.mxu0 0
        %2138 = vmatprep.subr.bf16.mxu0 0
        %2139 = vmatpush1.bf16.xpose.msra.mxu0 0
        %2140 = vmatprep.subr.bf16.mxu0 0
        %2141 = vmatpush1.bf16.xpose.msra.mxu0 0
        %2142 = vmatprep.subr.bf16.mxu0 0
        %2143 = vmatpush1.bf16.xpose.msra.mxu0 %v2126
        %2144 = vmatprep.subr.bf16.mxu0 0
        %2145 = vmatpush2.bf16.xpose.msra.mxu0 0
        %2146 = vmatprep.subr.bf16.mxu0 0
        %2147 = vmatpush2.bf16.xpose.msra.mxu0 0
        %2148 = vmatprep.subr.bf16.mxu0 0
        %2149 = vmatpush2.bf16.xpose.msra.mxu0 0
        %2150 = vmatprep.subr.bf16.mxu0 0
        %2151 = vmatpush2.bf16.xpose.msra.mxu0 0
        %2152 = vmatprep.subr.bf16.mxu0 0
        %2153 = vmatpush2.bf16.xpose.msra.mxu0 0
        %2154 = vmatprep.subr.bf16.mxu0 0
        %2155 = vmatpush2.bf16.xpose.msra.mxu0 0
        %2156 = vmatprep.subr.bf16.mxu0 0
        %2157 = vmatpush2.bf16.xpose.msra.mxu0 0
        %2158 = vmatprep.subr.bf16.mxu0 0
        %2159 = vmatpush2.bf16.xpose.msra.mxu0 0
        %2160 = vmatprep.mubr.bf16.mxu0 0
        %2161 = vmatmul.mubr.bf16.gmra.mxu0 %v2123
        %v2162 = vpop.f32.mrf.mxu0
        %v2163 = vadd.f32 %v1982, %v2162
        %v2164 = vpop.f32.mrf.mxu0
        %v2165 = vpop.f32.mrf.mxu0
        %v2166 = vpop.f32.mrf.mxu0
        %2167 = vdwg.mxu0
        %v2168 = vsel %vm1138, %v2025, -inf
        %2169 = vmax.xlane.f32.xlu0 %v2168
        %v2170 = vpop.xlane.xlu0 %2169
        %v2171 = vsel %vm1138, %v2071, -inf
        %2172 = vmax.xlane.f32.xlu0 %v2171
        %v2173 = vpop.xlane.xlu0 %2172
        %v2174 = vsel %vm1138, %v2117, -inf
        %2175 = vmax.xlane.f32.xlu0 %v2174
        %v2176 = vpop.xlane.xlu0 %2175
        %v2177 = vsel %vm1138, %v2163, -inf
        %2178 = vmax.xlane.f32.xlu0 %v2177
        %v2179 = vpop.xlane.xlu0 %2178
        %v2180 = vsub.f32 %v2025, %v2170
        %v2181 = vsub.f32 %v2071, %v2173
        %v2182 = vsub.f32 %v2117, %v2176
        %v2183 = vsub.f32 %v2163, %v2179
        %v2184 = vmul.f32 %v2180, 1.442695
        %v2185 = vpow.pop %v2184
        %v2186 = vmul.f32 %v2181, 1.442695
        %v2187 = vpow.pop %v2186
        %v2188 = vmul.f32 %v2182, 1.442695
        %v2189 = vpow.pop %v2188
        %v2190 = vmul.f32 %v2183, 1.442695
        %v2191 = vpow.pop %v2190
        %v2192 = vsel %vm1138, %v2185, 0.0
        %2193 = vadd.xlane.f32.xlu0 %v2192
        %v2194 = vpop.xlane.xlu0 %2193
        %v2195 = vsel %vm1138, %v2187, 0.0
        %2196 = vadd.xlane.f32.xlu0 %v2195
        %v2197 = vpop.xlane.xlu0 %2196
        %v2198 = vsel %vm1138, %v2189, 0.0
        %2199 = vadd.xlane.f32.xlu0 %v2198
        %v2200 = vpop.xlane.xlu0 %2199
        %v2201 = vsel %vm1138, %v2191, 0.0
        %2202 = vadd.xlane.f32.xlu0 %v2201
        %v2203 = vpop.xlane.xlu0 %2202
        %v2204 = vrcp.pop %v2194
        %v2205 = vrcp.pop %v2197
        %v2206 = vrcp.pop %v2200
        %v2207 = vrcp.pop %v2203
        %v2208 = vmul.f32 %v2185, %v2204
        %v2209 = vmul.f32 %v2187, %v2205
        %v2210 = vmul.f32 %v2189, %v2206
        %v2211 = vmul.f32 %v2191, %v2207
        %v2212 = vpack.c.bf16 %v2208, %v2208
        %v2213 = vpack.c.bf16 %v2209, %v2209
        %v2214 = vpack.c.bf16 %v2210, %v2210
        %v2215 = vpack.c.bf16 %v2211, %v2211
        %v2216 = vpack.c.bf16 %v1964, %v1964
        %v2217 = vpack.c.bf16 %v1965, %v1965
        %v2218 = vpack.c.bf16 %v1966, %v1966
        %v2219 = vpack.c.bf16 %v1967, %v1967
        %v2221 = vsel %vm1138, %v2212, 0
        %v2224 = vsel %vm1194, %v2216, 0
        %2226 = vmatprep.subr.bf16.mxu0 0
        %2227 = vmatpush1.bf16.msra.mxu0 0
        %2228 = vmatprep.subr.bf16.mxu0 0
        %2229 = vmatpush1.bf16.msra.mxu0 0
        %2230 = vmatprep.subr.bf16.mxu0 0
        %2231 = vmatpush1.bf16.msra.mxu0 0
        %2232 = vmatprep.subr.bf16.mxu0 0
        %2233 = vmatpush1.bf16.msra.mxu0 0
        %2234 = vmatprep.subr.bf16.mxu0 0
        %2235 = vmatpush1.bf16.msra.mxu0 0
        %2236 = vmatprep.subr.bf16.mxu0 0
        %2237 = vmatpush1.bf16.msra.mxu0 0
        %2238 = vmatprep.subr.bf16.mxu0 0
        %2239 = vmatpush1.bf16.msra.mxu0 0
        %2240 = vmatprep.subr.bf16.mxu0 0
        %2241 = vmatpush1.bf16.msra.mxu0 %v2224
        %2242 = vmatprep.subr.bf16.mxu0 0
        %2243 = vmatpush2.bf16.msra.mxu0 0
        %2244 = vmatprep.subr.bf16.mxu0 0
        %2245 = vmatpush2.bf16.msra.mxu0 0
        %2246 = vmatprep.subr.bf16.mxu0 0
        %2247 = vmatpush2.bf16.msra.mxu0 0
        %2248 = vmatprep.subr.bf16.mxu0 0
        %2249 = vmatpush2.bf16.msra.mxu0 0
        %2250 = vmatprep.subr.bf16.mxu0 0
        %2251 = vmatpush2.bf16.msra.mxu0 0
        %2252 = vmatprep.subr.bf16.mxu0 0
        %2253 = vmatpush2.bf16.msra.mxu0 0
        %2254 = vmatprep.subr.bf16.mxu0 0
        %2255 = vmatpush2.bf16.msra.mxu0 0
        %2256 = vmatprep.subr.bf16.mxu0 0
        %2257 = vmatpush2.bf16.msra.mxu0 0
        %2258 = vmatprep.mubr.bf16.mxu0 0
        %2259 = vmatmul.mubr.bf16.gmra.mxu0 %v2221
        %v2260 = vpop.f32.mrf.mxu0
        %v2261 = vadd.f32 0.0, %v2260
        %v2262 = vpop.f32.mrf.mxu0
        %v2263 = vpop.f32.mrf.mxu0
        %v2264 = vpop.f32.mrf.mxu0
        %2265 = vdwg.mxu0
        %v2267 = vsel %vm1138, %v2213, 0
        %v2270 = vsel %vm1194, %v2217, 0
        %2272 = vmatprep.subr.bf16.mxu0 0
        %2273 = vmatpush1.bf16.msra.mxu0 0
        %2274 = vmatprep.subr.bf16.mxu0 0
        %2275 = vmatpush1.bf16.msra.mxu0 0
        %2276 = vmatprep.subr.bf16.mxu0 0
        %2277 = vmatpush1.bf16.msra.mxu0 0
        %2278 = vmatprep.subr.bf16.mxu0 0
        %2279 = vmatpush1.bf16.msra.mxu0 0
        %2280 = vmatprep.subr.bf16.mxu0 0
        %2281 = vmatpush1.bf16.msra.mxu0 0
        %2282 = vmatprep.subr.bf16.mxu0 0
        %2283 = vmatpush1.bf16.msra.mxu0 0
        %2284 = vmatprep.subr.bf16.mxu0 0
        %2285 = vmatpush1.bf16.msra.mxu0 0
        %2286 = vmatprep.subr.bf16.mxu0 0
        %2287 = vmatpush1.bf16.msra.mxu0 %v2270
        %2288 = vmatprep.subr.bf16.mxu0 0
        %2289 = vmatpush2.bf16.msra.mxu0 0
        %2290 = vmatprep.subr.bf16.mxu0 0
        %2291 = vmatpush2.bf16.msra.mxu0 0
        %2292 = vmatprep.subr.bf16.mxu0 0
        %2293 = vmatpush2.bf16.msra.mxu0 0
        %2294 = vmatprep.subr.bf16.mxu0 0
        %2295 = vmatpush2.bf16.msra.mxu0 0
        %2296 = vmatprep.subr.bf16.mxu0 0
        %2297 = vmatpush2.bf16.msra.mxu0 0
        %2298 = vmatprep.subr.bf16.mxu0 0
        %2299 = vmatpush2.bf16.msra.mxu0 0
        %2300 = vmatprep.subr.bf16.mxu0 0
        %2301 = vmatpush2.bf16.msra.mxu0 0
        %2302 = vmatprep.subr.bf16.mxu0 0
        %2303 = vmatpush2.bf16.msra.mxu0 0
        %2304 = vmatprep.mubr.bf16.mxu0 0
        %2305 = vmatmul.mubr.bf16.gmra.mxu0 %v2267
        %v2306 = vpop.f32.mrf.mxu0
        %v2307 = vadd.f32 0.0, %v2306
        %v2308 = vpop.f32.mrf.mxu0
        %v2309 = vpop.f32.mrf.mxu0
        %v2310 = vpop.f32.mrf.mxu0
        %2311 = vdwg.mxu0
        %v2313 = vsel %vm1138, %v2214, 0
        %v2316 = vsel %vm1194, %v2218, 0
        %2318 = vmatprep.subr.bf16.mxu0 0
        %2319 = vmatpush1.bf16.msra.mxu0 0
        %2320 = vmatprep.subr.bf16.mxu0 0
        %2321 = vmatpush1.bf16.msra.mxu0 0
        %2322 = vmatprep.subr.bf16.mxu0 0
        %2323 = vmatpush1.bf16.msra.mxu0 0
        %2324 = vmatprep.subr.bf16.mxu0 0
        %2325 = vmatpush1.bf16.msra.mxu0 0
        %2326 = vmatprep.subr.bf16.mxu0 0
        %2327 = vmatpush1.bf16.msra.mxu0 0
        %2328 = vmatprep.subr.bf16.mxu0 0
        %2329 = vmatpush1.bf16.msra.mxu0 0
        %2330 = vmatprep.subr.bf16.mxu0 0
        %2331 = vmatpush1.bf16.msra.mxu0 0
        %2332 = vmatprep.subr.bf16.mxu0 0
        %2333 = vmatpush1.bf16.msra.mxu0 %v2316
        %2334 = vmatprep.subr.bf16.mxu0 0
        %2335 = vmatpush2.bf16.msra.mxu0 0
        %2336 = vmatprep.subr.bf16.mxu0 0
        %2337 = vmatpush2.bf16.msra.mxu0 0
        %2338 = vmatprep.subr.bf16.mxu0 0
        %2339 = vmatpush2.bf16.msra.mxu0 0
        %2340 = vmatprep.subr.bf16.mxu0 0
        %2341 = vmatpush2.bf16.msra.mxu0 0
        %2342 = vmatprep.subr.bf16.mxu0 0
        %2343 = vmatpush2.bf16.msra.mxu0 0
        %2344 = vmatprep.subr.bf16.mxu0 0
        %2345 = vmatpush2.bf16.msra.mxu0 0
        %2346 = vmatprep.subr.bf16.mxu0 0
        %2347 = vmatpush2.bf16.msra.mxu0 0
        %2348 = vmatprep.subr.bf16.mxu0 0
        %2349 = vmatpush2.bf16.msra.mxu0 0
        %2350 = vmatprep.mubr.bf16.mxu0 0
        %2351 = vmatmul.mubr.bf16.gmra.mxu0 %v2313
        %v2352 = vpop.f32.mrf.mxu0
        %v2353 = vadd.f32 0.0, %v2352
        %v2354 = vpop.f32.mrf.mxu0
        %v2355 = vpop.f32.mrf.mxu0
        %v2356 = vpop.f32.mrf.mxu0
        %2357 = vdwg.mxu0
        %v2359 = vsel %vm1138, %v2215, 0
        %v2362 = vsel %vm1194, %v2219, 0
        %2364 = vmatprep.subr.bf16.mxu0 0
        %2365 = vmatpush1.bf16.msra.mxu0 0
        %2366 = vmatprep.subr.bf16.mxu0 0
        %2367 = vmatpush1.bf16.msra.mxu0 0
        %2368 = vmatprep.subr.bf16.mxu0 0
        %2369 = vmatpush1.bf16.msra.mxu0 0
        %2370 = vmatprep.subr.bf16.mxu0 0
        %2371 = vmatpush1.bf16.msra.mxu0 0
        %2372 = vmatprep.subr.bf16.mxu0 0
        %2373 = vmatpush1.bf16.msra.mxu0 0
        %2374 = vmatprep.subr.bf16.mxu0 0
        %2375 = vmatpush1.bf16.msra.mxu0 0
        %2376 = vmatprep.subr.bf16.mxu0 0
        %2377 = vmatpush1.bf16.msra.mxu0 0
        %2378 = vmatprep.subr.bf16.mxu0 0
        %2379 = vmatpush1.bf16.msra.mxu0 %v2362
        %2380 = vmatprep.subr.bf16.mxu0 0
        %2381 = vmatpush2.bf16.msra.mxu0 0
        %2382 = vmatprep.subr.bf16.mxu0 0
        %2383 = vmatpush2.bf16.msra.mxu0 0
        %2384 = vmatprep.subr.bf16.mxu0 0
        %2385 = vmatpush2.bf16.msra.mxu0 0
        %2386 = vmatprep.subr.bf16.mxu0 0
        %2387 = vmatpush2.bf16.msra.mxu0 0
        %2388 = vmatprep.subr.bf16.mxu0 0
        %2389 = vmatpush2.bf16.msra.mxu0 0
        %2390 = vmatprep.subr.bf16.mxu0 0
        %2391 = vmatpush2.bf16.msra.mxu0 0
        %2392 = vmatprep.subr.bf16.mxu0 0
        %2393 = vmatpush2.bf16.msra.mxu0 0
        %2394 = vmatprep.subr.bf16.mxu0 0
        %2395 = vmatpush2.bf16.msra.mxu0 0
        %2396 = vmatprep.mubr.bf16.mxu0 0
        %2397 = vmatmul.mubr.bf16.gmra.mxu0 %v2359
        %v2398 = vpop.f32.mrf.mxu0
        %v2399 = vadd.f32 0.0, %v2398
        %v2400 = vpop.f32.mrf.mxu0
        %v2401 = vpop.f32.mrf.mxu0
        %v2402 = vpop.f32.mrf.mxu0
        %2403 = vdwg.mxu0
        %v2404 = vcombine.low %v2261, %v2353
        %v2405 = vcombine.high %v2261, %v2353
        %v2407 = vunpack.c.l.s4 1983009808
        %v2408 = vunpack.c.0.s8 %v2407
        %v2409 = vlaneseq
        %v2410 = vshrl.u32 %v2409, 7
        %v2411 = vsub.s32 %v2408, %v2410
        %v2412 = vrot.slane %v2404, %v2411
        %v2414 = vunpack.c.l.s4 1983009808
        %v2415 = vunpack.c.0.s8 %v2414
        %v2416 = vlaneseq
        %v2417 = vshrl.u32 %v2416, 7
        %v2418 = vsub.s32 %v2415, %v2417
        %v2419 = vrot.slane %v2405, %v2418
        %v2420 = vcombine.low %v2307, %v2399
        %v2421 = vcombine.high %v2307, %v2399
        %v2423 = vunpack.c.l.s4 1983009808
        %v2424 = vunpack.c.0.s8 %v2423
        %v2425 = vlaneseq
        %v2426 = vshrl.u32 %v2425, 7
        %v2427 = vsub.s32 %v2424, %v2426
        %v2428 = vrot.slane %v2420, %v2427
        %v2430 = vunpack.c.l.s4 1983009808
        %v2431 = vunpack.c.0.s8 %v2430
        %v2432 = vlaneseq
        %v2433 = vshrl.u32 %v2432, 7
        %v2434 = vsub.s32 %v2431, %v2433
        %v2435 = vrot.slane %v2421, %v2434
        %v2436 = vcombine.low %v2412, %v2428
        %v2437 = vcombine.high %v2412, %v2428
        %v2439 = vunpack.c.l.s4 1934713408
        %v2440 = vunpack.c.0.s8 %v2439
        %v2441 = vlaneseq
        %v2442 = vshrl.u32 %v2441, 7
        %v2443 = vsub.s32 %v2440, %v2442
        %v2444 = vrot.slane %v2436, %v2443
        %v2446 = vunpack.c.l.s4 1934713408
        %v2447 = vunpack.c.0.s8 %v2446
        %v2448 = vlaneseq
        %v2449 = vshrl.u32 %v2448, 7
        %v2450 = vsub.s32 %v2447, %v2449
        %v2451 = vrot.slane %v2437, %v2450
        %v2452 = vcombine.low %v2419, %v2435
        %v2453 = vcombine.high %v2419, %v2435
        %v2455 = vunpack.c.l.s4 1934713408
        %v2456 = vunpack.c.0.s8 %v2455
        %v2457 = vlaneseq
        %v2458 = vshrl.u32 %v2457, 7
        %v2459 = vsub.s32 %v2456, %v2458
        %v2460 = vrot.slane %v2452, %v2459
        %v2462 = vunpack.c.l.s4 1934713408
        %v2463 = vunpack.c.0.s8 %v2462
        %v2464 = vlaneseq
        %v2465 = vshrl.u32 %v2464, 7
        %v2466 = vsub.s32 %v2463, %v2465
        %v2467 = vrot.slane %v2453, %v2466
        %v2468 = vcombine.high %v2444, 0.0
        %v2469 = vcombine.high %v2451, 0.0
        %v2470 = vcombine.high %v2460, 0.0
        %v2471 = vcombine.high %v2467, 0.0
        %v2472 = vcombine.low %v2444, %v2451
        %v2474 = vunpack.c.l.s4 1983009808
        %v2475 = vunpack.c.0.s8 %v2474
        %v2476 = vlaneseq
        %v2477 = vshrl.u32 %v2476, 7
        %v2478 = vsub.s32 %v2475, %v2477
        %v2479 = vrot.slane %v2472, %v2478
        %v2480 = vcombine.low %v2468, %v2469
        %v2482 = vunpack.c.l.s4 1983009808
        %v2483 = vunpack.c.0.s8 %v2482
        %v2484 = vlaneseq
        %v2485 = vshrl.u32 %v2484, 7
        %v2486 = vsub.s32 %v2483, %v2485
        %v2487 = vrot.slane %v2480, %v2486
        %v2488 = vcombine.low %v2460, %v2467
        %v2490 = vunpack.c.l.s4 1983009808
        %v2491 = vunpack.c.0.s8 %v2490
        %v2492 = vlaneseq
        %v2493 = vshrl.u32 %v2492, 7
        %v2494 = vsub.s32 %v2491, %v2493
        %v2495 = vrot.slane %v2488, %v2494
        %v2496 = vcombine.low %v2470, %v2471
        %v2498 = vunpack.c.l.s4 1983009808
        %v2499 = vunpack.c.0.s8 %v2498
        %v2500 = vlaneseq
        %v2501 = vshrl.u32 %v2500, 7
        %v2502 = vsub.s32 %v2499, %v2501
        %v2503 = vrot.slane %v2496, %v2502
        %v2504 = vcombine.low %v2479, %v2487
        %v2505 = vcombine.high %v2479, %v2487
        %v2507 = vunpack.c.l.s4 1934713408
        %v2508 = vunpack.c.0.s8 %v2507
        %v2509 = vlaneseq
        %v2510 = vshrl.u32 %v2509, 7
        %v2511 = vsub.s32 %v2508, %v2510
        %v2512 = vrot.slane %v2504, %v2511
        %v2514 = vunpack.c.l.s4 1934713408
        %v2515 = vunpack.c.0.s8 %v2514
        %v2516 = vlaneseq
        %v2517 = vshrl.u32 %v2516, 7
        %v2518 = vsub.s32 %v2515, %v2517
        %v2519 = vrot.slane %v2505, %v2518
        %v2520 = vcombine.low %v2495, %v2503
        %v2521 = vcombine.high %v2495, %v2503
        %v2523 = vunpack.c.l.s4 1934713408
        %v2524 = vunpack.c.0.s8 %v2523
        %v2525 = vlaneseq
        %v2526 = vshrl.u32 %v2525, 7
        %v2527 = vsub.s32 %v2524, %v2526
        %v2528 = vrot.slane %v2520, %v2527
        %v2530 = vunpack.c.l.s4 1934713408
        %v2531 = vunpack.c.0.s8 %v2530
        %v2532 = vlaneseq
        %v2533 = vshrl.u32 %v2532, 7
        %v2534 = vsub.s32 %v2531, %v2533
        %v2535 = vrot.slane %v2521, %v2534
        %v2536 = vcombine.low %v2512, %v2528
        %v2537 = vcombine.high %v2512, %v2528
        %v2538 = vcombine.low %v2519, %v2535
        %v2539 = vcombine.high %v2519, %v2535
        %2541 = vrot.lane.b32.xlu0 %v2537, 16
        %v2542 = vpop.permute.xlu0 %2541
        %2545 = vrot.lane.b32.xlu0 %v2538, 32
        %v2546 = vpop.permute.xlu0 %2545
        %2549 = vrot.lane.b32.xlu0 %v2539, 48
        %v2550 = vpop.permute.xlu0 %2549
        %v2552 = vsel %vm953, %v2536, %v2542
        %v2553 = vsel %vm451, %v2552, %v2546
        %v2554 = vsel %vm1526, %v2553, %v2550
        %v2555 = vpack.c.bf16 %v2554, %v1527
        %v2556 = vld [vmem:[%s387] sm:$0xf]
        %v2557 = vld [vmem:[%s387 + $0x4] sm:$0xf]
        %v2558 = vld [vmem:[%s387 + $0x8] sm:$0xf]
        %v2559 = vld [vmem:[%s387 + $0xc] sm:$0xf]
        %v2560 = vld [vmem:[%s387 + $0x10] sm:$0xf]
        %v2561 = vld [vmem:[%s387 + $0x14] sm:$0xf]
        %v2562 = vld [vmem:[%s387 + $0x18] sm:$0xf]
        %v2563 = vld [vmem:[%s387 + $0x1c] sm:$0xf]
        %v2564 = vlaneseq
        %v2565 = vshrl.u32 %v2564, 7
        %v2566 = vsub.s32 1, %v2565
        %v2567 = vrot.slane %v414, %v2566
        %v2576 = vunpack.c.l.b16 %v2556
        %v2577 = vunpack.c.l.b16 %v2557
        %v2578 = vunpack.c.l.b16 %v2558
        %v2579 = vunpack.c.l.b16 %v2559
        %v2580 = vunpack.c.l.b16 %v2560
        %v2581 = vunpack.c.l.b16 %v2561
        %v2582 = vunpack.c.l.b16 %v2562
        %v2583 = vunpack.c.l.b16 %v2563
        %v2584 = vpack.c.b16 %v2577, %v2576
        %v2585 = vpack.c.b16 %v2579, %v2578
        %v2586 = vpack.c.b16 %v2581, %v2580
        %v2587 = vpack.c.b16 %v2583, %v2582
        %vm2592 = vcmask 523264
        %v2594 = vsel %vm2592, %v2555, 0
        %2596 = vmatprep.subr.bf16.mxu0 0
        %2597 = vmatpush1.bf16.msra.mxu0 0
        %2598 = vmatprep.subr.bf16.mxu0 0
        %2599 = vmatpush1.bf16.msra.mxu0 0
        %2600 = vmatprep.subr.bf16.mxu0 0
        %2601 = vmatpush1.bf16.msra.mxu0 0
        %2602 = vmatprep.subr.bf16.mxu0 0
        %2603 = vmatpush1.bf16.msra.mxu0 0
        %2604 = vmatprep.subr.bf16.mxu0 0
        %2605 = vmatpush1.bf16.msra.mxu0 %v2587
        %2606 = vmatprep.subr.bf16.mxu0 0
        %2607 = vmatpush1.bf16.msra.mxu0 %v2586
        %2608 = vmatprep.subr.bf16.mxu0 0
        %2609 = vmatpush1.bf16.msra.mxu0 %v2585
        %2610 = vmatprep.subr.bf16.mxu0 0
        %2611 = vmatpush1.bf16.msra.mxu0 %v2584
        %2612 = vmatprep.subr.bf16.mxu0 0
        %2613 = vmatpush2.bf16.msra.mxu0 0
        %2614 = vmatprep.subr.bf16.mxu0 0
        %2615 = vmatpush2.bf16.msra.mxu0 0
        %2616 = vmatprep.subr.bf16.mxu0 0
        %2617 = vmatpush2.bf16.msra.mxu0 0
        %2618 = vmatprep.subr.bf16.mxu0 0
        %2619 = vmatpush2.bf16.msra.mxu0 0
        %2620 = vmatprep.subr.bf16.mxu0 0
        %2621 = vmatpush2.bf16.msra.mxu0 0
        %2622 = vmatprep.subr.bf16.mxu0 0
        %2623 = vmatpush2.bf16.msra.mxu0 0
        %2624 = vmatprep.subr.bf16.mxu0 0
        %2625 = vmatpush2.bf16.msra.mxu0 0
        %2626 = vmatprep.subr.bf16.mxu0 0
        %2627 = vmatpush2.bf16.msra.mxu0 0
        %2628 = vmatprep.mubr.bf16.mxu0 0
        %2629 = vmatmul.mubr.bf16.gmra.mxu0 %v2594
        %v2630 = vpop.f32.mrf.mxu0
        %v2631 = vadd.f32 %v2567, %v2630
        %v2632 = vpop.f32.mrf.mxu0
        %v2633 = vpop.f32.mrf.mxu0
        %v2634 = vadd.f32 %v2567, %v2633
        %v2635 = vpop.f32.mrf.mxu0
        %2636 = vdwg.mxu0
        %v2637 = vadd.f32 %v416, %v2631
        %v2638 = vadd.f32 %v417, %v2634
        %v2639 = vsel %vm451, %v2637, 0.0
        %2640 = vadd.xlane.f32.xlu0 %v2639
        %v2641 = vpop.xlane.xlu0 %2640
        %v2642 = vsel %vm451, %v2638, 0.0
        %2643 = vadd.xlane.f32.xlu0 %v2642
        %v2644 = vpop.xlane.xlu0 %2643
        %v2645 = vrcp.pop 32.0
        %v2646 = vmul.f32 %v2641, %v2645
        %v2647 = vmul.f32 %v2644, %v2645
        %v2648 = vsub.f32 %v2637, %v2646
        %v2649 = vsub.f32 %v2638, %v2647
        %v2650 = vmul.f32 %v2648, %v2648
        %v2651 = vmul.f32 %v2649, %v2649
        %v2652 = vsel %vm451, %v2650, 0.0
        %2653 = vadd.xlane.f32.xlu0 %v2652
        %v2654 = vpop.xlane.xlu0 %2653
        %v2655 = vsel %vm451, %v2651, 0.0
        %2656 = vadd.xlane.f32.xlu0 %v2655
        %v2657 = vpop.xlane.xlu0 %2656
        %v2658 = vmul.f32 %v2654, %v2645
        %v2659 = vmul.f32 %v2657, %v2645
        %v2660 = vadd.f32 %v2658, 1e-05
        %v2661 = vadd.f32 %v2659, 1e-05
        %v2662 = vrsqrt.pop %v2660
        %v2663 = vrsqrt.pop %v2661
        %v2664 = vmul.f32 %v2648, %v2662
        %v2665 = vmul.f32 %v2649, %v2663
        %v2666 = vlaneseq
        %v2667 = vshrl.u32 %v2666, 7
        %v2668 = vsub.s32 2, %v2667
        %v2669 = vrot.slane %v414, %v2668
        %v2670 = vmul.f32 %v2664, %v2669
        %v2671 = vmul.f32 %v2665, %v2669
        %v2672 = vlaneseq
        %v2673 = vshrl.u32 %v2672, 7
        %v2674 = vsub.s32 3, %v2673
        %v2675 = vrot.slane %v414, %v2674
        %v2676 = vadd.f32 %v2670, %v2675
        %v2677 = vadd.f32 %v2671, %v2675
        %v2678 = vpack.c.bf16 %v2677, %v2676
        %v2679 = vld [vmem:[%s392] sm:$0xf]
        %v2680 = vld [vmem:[%s392 + $0x4] sm:$0xf]
        %v2681 = vld [vmem:[%s392 + $0x8] sm:$0xf]
        %v2682 = vld [vmem:[%s392 + $0xc] sm:$0xf]
        %v2683 = vlaneseq
        %v2684 = vshrl.u32 %v2683, 7
        %v2685 = vsub.s32 4, %v2684
        %v2686 = vrot.slane %v414, %v2685
        %v2691 = vunpack.c.l.b16 %v2679
        %v2692 = vunpack.c.l.b16 %v2680
        %v2693 = vunpack.c.l.b16 %v2681
        %v2694 = vunpack.c.l.b16 %v2682
        %v2695 = vpack.c.b16 %v2692, %v2691
        %v2696 = vpack.c.b16 %v2694, %v2693
        %v2700 = vsel %vm451, %v2678, 0
        %2702 = vmatprep.subr.bf16.mxu0 0
        %2703 = vmatpush1.bf16.msra.mxu0 0
        %2704 = vmatprep.subr.bf16.mxu0 0
        %2705 = vmatpush1.bf16.msra.mxu0 0
        %2706 = vmatprep.subr.bf16.mxu0 0
        %2707 = vmatpush1.bf16.msra.mxu0 0
        %2708 = vmatprep.subr.bf16.mxu0 0
        %2709 = vmatpush1.bf16.msra.mxu0 0
        %2710 = vmatprep.subr.bf16.mxu0 0
        %2711 = vmatpush1.bf16.msra.mxu0 0
        %2712 = vmatprep.subr.bf16.mxu0 0
        %2713 = vmatpush1.bf16.msra.mxu0 0
        %2714 = vmatprep.subr.bf16.mxu0 0
        %2715 = vmatpush1.bf16.msra.mxu0 %v2696
        %2716 = vmatprep.subr.bf16.mxu0 0
        %2717 = vmatpush1.bf16.msra.mxu0 %v2695
        %2718 = vmatprep.subr.bf16.mxu0 0
        %2719 = vmatpush2.bf16.msra.mxu0 0
        %2720 = vmatprep.subr.bf16.mxu0 0
        %2721 = vmatpush2.bf16.msra.mxu0 0
        %2722 = vmatprep.subr.bf16.mxu0 0
        %2723 = vmatpush2.bf16.msra.mxu0 0
        %2724 = vmatprep.subr.bf16.mxu0 0
        %2725 = vmatpush2.bf16.msra.mxu0 0
        %2726 = vmatprep.subr.bf16.mxu0 0
        %2727 = vmatpush2.bf16.msra.mxu0 0
        %2728 = vmatprep.subr.bf16.mxu0 0
        %2729 = vmatpush2.bf16.msra.mxu0 0
        %2730 = vmatprep.subr.bf16.mxu0 0
        %2731 = vmatpush2.bf16.msra.mxu0 0
        %2732 = vmatprep.subr.bf16.mxu0 0
        %2733 = vmatpush2.bf16.msra.mxu0 0
        %2734 = vmatprep.mubr.bf16.mxu0 0
        %2735 = vmatmul.mubr.bf16.gmra.mxu0 %v2700
        %v2736 = vpop.f32.mrf.mxu0
        %v2737 = vadd.f32 %v2686, %v2736
        %v2738 = vpop.f32.mrf.mxu0
        %v2739 = vpop.f32.mrf.mxu0
        %v2740 = vadd.f32 %v2686, %v2739
        %v2741 = vpop.f32.mrf.mxu0
        %2742 = vdwg.mxu0
        %v2743 = vmax.f32 %v2737, 0.0
        %v2744 = vmax.f32 %v2740, 0.0
        %v2745 = vpack.c.bf16 %v2744, %v2743
        %v2746 = vld [vmem:[%s397] sm:$0xf]
        %v2747 = vld [vmem:[%s397 + $0x4] sm:$0xf]
        %v2748 = vld [vmem:[%s397 + $0x8] sm:$0xf]
        %v2749 = vld [vmem:[%s397 + $0xc] sm:$0xf]
        %v2750 = vld [vmem:[%s397 + $0x10] sm:$0xf]
        %v2751 = vld [vmem:[%s397 + $0x14] sm:$0xf]
        %v2752 = vld [vmem:[%s397 + $0x18] sm:$0xf]
        %v2753 = vld [vmem:[%s397 + $0x1c] sm:$0xf]
        %v2754 = vlaneseq
        %v2755 = vshrl.u32 %v2754, 7
        %v2756 = vsub.s32 5, %v2755
        %v2757 = vrot.slane %v414, %v2756
        %v2766 = vunpack.c.l.b16 %v2746
        %v2767 = vunpack.c.l.b16 %v2747
        %v2768 = vunpack.c.l.b16 %v2748
        %v2769 = vunpack.c.l.b16 %v2749
        %v2770 = vunpack.c.l.b16 %v2750
        %v2771 = vunpack.c.l.b16 %v2751
        %v2772 = vunpack.c.l.b16 %v2752
        %v2773 = vunpack.c.l.b16 %v2753
        %v2774 = vpack.c.b16 %v2767, %v2766
        %v2775 = vpack.c.b16 %v2769, %v2768
        %v2776 = vpack.c.b16 %v2771, %v2770
        %v2777 = vpack.c.b16 %v2773, %v2772
        %v2783 = vsel %vm2592, %v2745, 0
        %2785 = vmatprep.subr.bf16.mxu0 0
        %2786 = vmatpush1.bf16.msra.mxu0 0
        %2787 = vmatprep.subr.bf16.mxu0 0
        %2788 = vmatpush1.bf16.msra.mxu0 0
        %2789 = vmatprep.subr.bf16.mxu0 0
        %2790 = vmatpush1.bf16.msra.mxu0 0
        %2791 = vmatprep.subr.bf16.mxu0 0
        %2792 = vmatpush1.bf16.msra.mxu0 0
        %2793 = vmatprep.subr.bf16.mxu0 0
        %2794 = vmatpush1.bf16.msra.mxu0 %v2777
        %2795 = vmatprep.subr.bf16.mxu0 0
        %2796 = vmatpush1.bf16.msra.mxu0 %v2776
        %2797 = vmatprep.subr.bf16.mxu0 0
        %2798 = vmatpush1.bf16.msra.mxu0 %v2775
        %2799 = vmatprep.subr.bf16.mxu0 0
        %2800 = vmatpush1.bf16.msra.mxu0 %v2774
        %2801 = vmatprep.subr.bf16.mxu0 0
        %2802 = vmatpush2.bf16.msra.mxu0 0
        %2803 = vmatprep.subr.bf16.mxu0 0
        %2804 = vmatpush2.bf16.msra.mxu0 0
        %2805 = vmatprep.subr.bf16.mxu0 0
        %2806 = vmatpush2.bf16.msra.mxu0 0
        %2807 = vmatprep.subr.bf16.mxu0 0
        %2808 = vmatpush2.bf16.msra.mxu0 0
        %2809 = vmatprep.subr.bf16.mxu0 0
        %2810 = vmatpush2.bf16.msra.mxu0 0
        %2811 = vmatprep.subr.bf16.mxu0 0
        %2812 = vmatpush2.bf16.msra.mxu0 0
        %2813 = vmatprep.subr.bf16.mxu0 0
        %2814 = vmatpush2.bf16.msra.mxu0 0
        %2815 = vmatprep.subr.bf16.mxu0 0
        %2816 = vmatpush2.bf16.msra.mxu0 0
        %2817 = vmatprep.mubr.bf16.mxu0 0
        %2818 = vmatmul.mubr.bf16.gmra.mxu0 %v2783
        %v2819 = vpop.f32.mrf.mxu0
        %v2820 = vadd.f32 %v2757, %v2819
        %v2821 = vpop.f32.mrf.mxu0
        %v2822 = vpop.f32.mrf.mxu0
        %v2823 = vadd.f32 %v2757, %v2822
        %v2824 = vpop.f32.mrf.mxu0
        %2825 = vdwg.mxu0
        %v2826 = vadd.f32 %v2676, %v2820
        %v2827 = vadd.f32 %v2677, %v2823
        %v2828 = vsel %vm451, %v2826, 0.0
        %2829 = vadd.xlane.f32.xlu0 %v2828
        %v2830 = vpop.xlane.xlu0 %2829
        %v2831 = vsel %vm451, %v2827, 0.0
        %2832 = vadd.xlane.f32.xlu0 %v2831
        %v2833 = vpop.xlane.xlu0 %2832
        %v2834 = vmul.f32 %v2830, %v2645
        %v2835 = vmul.f32 %v2833, %v2645
        %v2836 = vsub.f32 %v2826, %v2834
        %v2837 = vsub.f32 %v2827, %v2835
        %v2838 = vmul.f32 %v2836, %v2836
        %v2839 = vmul.f32 %v2837, %v2837
        %v2840 = vsel %vm451, %v2838, 0.0
        %2841 = vadd.xlane.f32.xlu0 %v2840
        %v2842 = vpop.xlane.xlu0 %2841
        %v2843 = vsel %vm451, %v2839, 0.0
        %2844 = vadd.xlane.f32.xlu0 %v2843
        %v2845 = vpop.xlane.xlu0 %2844
        %v2846 = vmul.f32 %v2842, %v2645
        %v2847 = vmul.f32 %v2845, %v2645
        %v2848 = vadd.f32 %v2846, 1e-05
        %v2849 = vadd.f32 %v2847, 1e-05
        %v2850 = vrsqrt.pop %v2848
        %v2851 = vrsqrt.pop %v2849
        %v2852 = vmul.f32 %v2836, %v2850
        %v2853 = vmul.f32 %v2837, %v2851
        %v2854 = vlaneseq
        %v2855 = vshrl.u32 %v2854, 7
        %v2856 = vsub.s32 6, %v2855
        %v2857 = vrot.slane %v414, %v2856
        %v2858 = vmul.f32 %v2852, %v2857
        %v2859 = vmul.f32 %v2853, %v2857
        %v2860 = vlaneseq
        %v2861 = vshrl.u32 %v2860, 7
        %v2862 = vsub.s32 7, %v2861
        %v2863 = vrot.slane %v414, %v2862
        %v2864 = vadd.f32 %v2858, %v2863
        %v2865 = vadd.f32 %v2859, %v2863
        %2866 = vst.msk [vmem:[#allocation2] sm:$0xff] %vm451, %v2864
        %2867 = vst.msk [vmem:[#allocation2 + $0x8] sm:$0xff] %vm451, %v2865
        // Predicated region
        $region53: #{tpu_custom_call.1} parent=47 // pred_check
          %p2868 = pneg %p231
        $region54: #{tpu_custom_call.1} parent=47 // pred_check_branch
          %2870 = sbr.rel (%p2868) target = $region56
        $region55: #{tpu_custom_call.1} parent=47 // pred_region
          %s2871 = smul.u32 2, %s23
          %s2873 = ssub.s32 256, 256
          %2874 = vsyncadd [#allocation3], %s2873
          %s2875 = smul.addr %s2871, 128
          %s2876 = scalar_lea.hbm %s7, %s2875
          %s2877 = sshll.u32 [#allocation2], 4
          %s2878 = int_to_ptr.vmem [resolvable:$true] %s2877
          %2883 = dma.vmem_to_hbm [thread:$0]  %s2878, 256, %s2876, [#allocation3], 128, 128, 8
        $region56: #{tpu_custom_call.1} parent=47 // pred_fallthru
          _
        // Predicated region
        $region57: #{tpu_custom_call.1} parent=47 // pred_check
          %p2884 = pneg %p231
        $region58: #{tpu_custom_call.1} parent=47 // pred_check_branch
          %2886 = sbr.rel (%p2884) target = $region60
        $region59: #{tpu_custom_call.1} parent=47 // pred_region
          %2887 = dma.done [#allocation3], 256
        $region60: #{tpu_custom_call.1} parent=47 // pred_fallthru
          _
      $region48: #{tpu_custom_call.1} parent=5 // pred_fallthru
        _
      %p2888 = scmp.le.s32.totalorder 2, %s14
      // Predicated region
      $region61: #{tpu_custom_call.1} parent=5 // pred_check
        %p2889 = pneg %p2888
      $region62: #{tpu_custom_call.1} parent=5 // pred_check_branch
        %2891 = sbr.rel (%p2889) target = $region64
      $region63: #{tpu_custom_call.1} parent=5 // pred_region
        %s2892 = ssub.s32 %s14, 2
      $region64: #{tpu_custom_call.1} parent=5 // pred_fallthru
        _
    $region6: #{tpu_custom_call.1} parent=1 // loop_footer
      %s18 = sadd.s32 1, %s14
    $region7: #{tpu_custom_call.1} parent=1 // loop_footer_branch
      %13 = sbr.rel target = $region3
    $region8: #{tpu_custom_call.1} parent=1 // loop_exit
      _
    %2893 = vsyncpa [#allocation3], 1
    %s2894 = scalar_lea.sflag [#allocation3], 1
    %2895 = vsyncpa %s2894, 1

</llo_original>
